<compile_context>
chip_gen: v6e
topology: v6e:2x2x1
jax: 0.10.0
libtpu: 0.0.40
codegen_flags: <defaults>
</compile_context>

<pallas_src>
import numpy as np
import jax
import jax.numpy as jnp
from jax.experimental import pallas as pl
from jax.experimental.pallas import tpu as pltpu

# ---- config (small shapes consistent with the module) ----
B = 2          # batch
L = 8          # max_len (sequence length)
E = 32         # emb_dim
H = 32         # hidden_layer_num
C = 4          # class_num


def _gate_update(gates, c_prev):
    """LSTM activations on (B, 4H) preactivations, PyTorch gate order i,f,g,o.

    Full-vreg sigmoid + tanh blended with a static lane mask (2 EUP pushes
    instead of 4 quarter-width sliced activations).
    """
    lane = jax.lax.broadcasted_iota(jnp.int32, gates.shape, 1)
    is_g = (lane >= 2 * H) & (lane < 3 * H)
    act = jnp.where(is_g, jnp.tanh(gates), jax.nn.sigmoid(gates))
    i = act[:, 0 * H:1 * H]
    f = act[:, 1 * H:2 * H]
    g = act[:, 2 * H:3 * H]
    o = act[:, 3 * H:4 * H]
    c_new = f * c_prev + i * g
    h_new = o * jnp.tanh(c_new)
    return h_new, c_new


def lstm_fc_kernel(x_ref, wih1_ref, b1_ref, whh1_ref,
                   wf2_ref, b2_ref, fcw_ref, fcb_ref,
                   out_ref):
    # x_ref:    (L*B, E)   time-major, flattened
    # wih1_ref: (E, 4H)    layer-1 input weights, pre-transposed
    # b1_ref:   (1, 4H)    layer-1 bias (b_ih + b_hh)
    # whh1_ref: (H, 4H)    layer-1 recurrent weights, pre-transposed
    # wf2_ref:  (2H, 4H)   layer-2 fused [W_ih^T ; W_hh^T]
    # b2_ref:   (1, 4H)    layer-2 bias
    # fcw_ref:  (L*H, C)   fc weights, pre-transposed
    # fcb_ref:  (1, C)     fc bias
    # out_ref:  (B, C)

    # Hoisted layer-1 input projection for ALL timesteps at once (bias folded).
    xin = jnp.dot(x_ref[...], wih1_ref[...],
                  preferred_element_type=jnp.float32) + b1_ref[...]   # (L*B, 4H)

    whh1 = whh1_ref[...]
    wf2 = wf2_ref[...]
    b2 = b2_ref[...]

    h1 = jnp.zeros((B, H), jnp.float32)
    c1 = jnp.zeros((B, H), jnp.float32)
    h2 = jnp.zeros((B, H), jnp.float32)
    c2 = jnp.zeros((B, H), jnp.float32)

    h2_steps = []
    for t in range(L):                                   # static, fully unrolled
        # layer 1: input term precomputed; only the recurrent matmul per step
        gates1 = xin[t * B:(t + 1) * B, :] + jnp.dot(
            h1, whh1, preferred_element_type=jnp.float32)
        h1, c1 = _gate_update(gates1, c1)

        # layer 2: fused input+recurrent matmul on concat([h1, h2_prev])
        inp2 = jnp.concatenate([h1, h2], axis=-1)        # (B, 2H)
        gates2 = jnp.dot(inp2, wf2, preferred_element_type=jnp.float32) + b2
        h2, c2 = _gate_update(gates2, c2)

        h2_steps.append(h2)

    # Epilogue: one lane-dense (B, L*H) @ (L*H, C) matmul + single output store.
    h2_all = jnp.concatenate(h2_steps, axis=-1)          # (B, L*H)
    out_ref[...] = (jnp.dot(h2_all, fcw_ref[...],
                            preferred_element_type=jnp.float32)
                    + fcb_ref[...])


def lstm_forward(x, params):
    """x: (B, L, E) float32, batch_first like the PyTorch module."""
    # Trace-time layout prep: time-major flatten + weight pre-transposition so
    # every in-kernel operand is lane-dense and no `.T` happens in the kernel.
    x_flat = jnp.transpose(x, (1, 0, 2)).reshape(L * B, E)            # (L*B, E)
    wih1_t = params["w_ih_l0"].T                                      # (E, 4H)
    whh1_t = params["w_hh_l0"].T                                      # (H, 4H)
    wf2 = jnp.concatenate([params["w_ih_l1"].T,
                           params["w_hh_l1"].T], axis=0)              # (2H, 4H)
    fcw_t = params["fc_w"].T                                          # (L*H, C)

    vmem_spec = lambda: pl.BlockSpec(memory_space=pltpu.MemorySpace.VMEM)

    return pl.pallas_call(
        lstm_fc_kernel,
        out_shape=jax.ShapeDtypeStruct((B, C), jnp.float32),
        in_specs=[vmem_spec() for _ in range(8)],
        out_specs=vmem_spec(),
    )(x_flat, wih1_t, params["b_l0"], whh1_t,
      wf2, params["b_l1"], fcw_t, params["fc_b"])


# ---------------- pure-JAX reference (PyTorch semantics, eval mode) -----------

def _lstm_cell_ref(inp, h_prev, c_prev, w_ih, w_hh, b):
    gates = (jnp.dot(inp, w_ih.T, preferred_element_type=jnp.float32)
             + jnp.dot(h_prev, w_hh.T, preferred_element_type=jnp.float32)
             + b)
    i = jax.nn.sigmoid(gates[:, 0 * H:1 * H])
    f = jax.nn.sigmoid(gates[:, 1 * H:2 * H])
    g = jnp.tanh(gates[:, 2 * H:3 * H])
    o = jax.nn.sigmoid(gates[:, 3 * H:4 * H])
    c_new = f * c_prev + i * g
    h_new = o * jnp.tanh(c_new)
    return h_new, c_new


def ref_forward(x, params):
    h1 = jnp.zeros((B, H), jnp.float32)
    c1 = jnp.zeros((B, H), jnp.float32)
    h2 = jnp.zeros((B, H), jnp.float32)
    c2 = jnp.zeros((B, H), jnp.float32)
    outs = []
    for t in range(L):
        h1, c1 = _lstm_cell_ref(x[:, t, :], h1, c1,
                                params["w_ih_l0"], params["w_hh_l0"], params["b_l0"])
        h2, c2 = _lstm_cell_ref(h1, h2, c2,
                                params["w_ih_l1"], params["w_hh_l1"], params["b_l1"])
        outs.append(h2)
    lstm_out = jnp.stack(outs, axis=1).reshape(B, L * H)
    return lstm_out @ params["fc_w"].T + params["fc_b"][0]


def init_params(key):
    """Deterministic init mimicking PyTorch defaults (uniform(-k, k))."""
    ks = jax.random.split(key, 9)
    k_lstm = 1.0 / np.sqrt(H)
    k_fc = 1.0 / np.sqrt(H * L)
    u = lambda k, shape, lim: jax.random.uniform(k, shape, jnp.float32, -lim, lim)
    return {
        "w_ih_l0": u(ks[0], (4 * H, E), k_lstm),
        "w_hh_l0": u(ks[1], (4 * H, H), k_lstm),
        # b = b_ih + b_hh, folded into one (1, 4H) bias per layer
        "b_l0":    u(ks[2], (1, 4 * H), k_lstm) + u(ks[3], (1, 4 * H), k_lstm),
        "w_ih_l1": u(ks[4], (4 * H, H), k_lstm),
        "w_hh_l1": u(ks[5], (4 * H, H), k_lstm),
        "b_l1":    u(ks[6], (1, 4 * H), k_lstm) + u(ks[7], (1, 4 * H), k_lstm),
        "fc_w":    u(ks[8], (C, H * L), k_fc),
        "fc_b":    jnp.zeros((1, C), jnp.float32),
    }


if __name__ == "__main__":
    key = jax.random.PRNGKey(0)
    kx, kp = jax.random.split(key)
    x = jax.random.normal(kx, (B, L, E), jnp.float32)   # (batch, seq, emb_dim)
    params = init_params(kp)

    pred = lstm_forward(x, params)
    jax.block_until_ready(pred)

    ref = ref_forward(x, params)
    np.testing.assert_allclose(np.asarray(pred), np.asarray(ref),
                               rtol=1e-5, atol=1e-5)
    print("KERNEL_OK")
</pallas_src>

<mosaic_0001>
module attributes {stable_mosaic.version = 11 : i64} {
  func.func @lstm_fc_kernel(%arg0: memref<16x32xf32, #tpu.memory_space<vmem>>, %arg1: memref<32x128xf32, #tpu.memory_space<vmem>>, %arg2: memref<1x128xf32, #tpu.memory_space<vmem>>, %arg3: memref<32x128xf32, #tpu.memory_space<vmem>>, %arg4: memref<64x128xf32, #tpu.memory_space<vmem>>, %arg5: memref<1x128xf32, #tpu.memory_space<vmem>>, %arg6: memref<256x4xf32, #tpu.memory_space<vmem>>, %arg7: memref<1x4xf32, #tpu.memory_space<vmem>>, %arg8: memref<2x4xf32, #tpu.memory_space<vmem>>) attributes {dimension_semantics = [], scalar_prefetch = 0 : i64, scratch_operands = 0 : i64, tpu.core_type = #tpu.core_type<tc>} {
    %c0 = arith.constant 0 : index
    %c0_0 = arith.constant 0 : index
    %0 = vector.load %arg0[%c0, %c0_0] : memref<16x32xf32, #tpu.memory_space<vmem>>, vector<16x32xf32>
    %c0_1 = arith.constant 0 : index
    %c0_2 = arith.constant 0 : index
    %1 = vector.load %arg1[%c0_1, %c0_2] : memref<32x128xf32, #tpu.memory_space<vmem>>, vector<32x128xf32>
    %cst = arith.constant dense<0.000000e+00> : vector<16x128xf32>
    %2 = tpu.matmul %0, %1, %cst {dimension_numbers = #tpu.dot_dimension_numbers<[1], [0], [0], [1], [0, 0, 1, 1], [], []>} : vector<16x32xf32>, vector<32x128xf32>, vector<16x128xf32> -> vector<16x128xf32>
    %c0_3 = arith.constant 0 : index
    %c0_4 = arith.constant 0 : index
    %3 = vector.load %arg2[%c0_3, %c0_4] : memref<1x128xf32, #tpu.memory_space<vmem>>, vector<1x128xf32>
    %4 = vector.broadcast %3 : vector<1x128xf32> to vector<16x128xf32>
    %5 = arith.addf %2, %4 : vector<16x128xf32>
    %c0_5 = arith.constant 0 : index
    %c0_6 = arith.constant 0 : index
    %6 = vector.load %arg3[%c0_5, %c0_6] : memref<32x128xf32, #tpu.memory_space<vmem>>, vector<32x128xf32>
    %c0_7 = arith.constant 0 : index
    %c0_8 = arith.constant 0 : index
    %7 = vector.load %arg4[%c0_7, %c0_8] : memref<64x128xf32, #tpu.memory_space<vmem>>, vector<64x128xf32>
    %c0_9 = arith.constant 0 : index
    %c0_10 = arith.constant 0 : index
    %8 = vector.load %arg5[%c0_9, %c0_10] : memref<1x128xf32, #tpu.memory_space<vmem>>, vector<1x128xf32>
    %cst_11 = arith.constant 0.000000e+00 : f32
    %9 = vector.broadcast %cst_11 : f32 to vector<2x32xf32>
    %cst_12 = arith.constant 0.000000e+00 : f32
    %10 = vector.broadcast %cst_12 : f32 to vector<2x32xf32>
    %cst_13 = arith.constant 0.000000e+00 : f32
    %11 = vector.broadcast %cst_13 : f32 to vector<2x32xf32>
    %cst_14 = arith.constant 0.000000e+00 : f32
    %12 = vector.broadcast %cst_14 : f32 to vector<2x32xf32>
    %13 = vector.extract_strided_slice %5 {offsets = [0, 0], sizes = [2, 128], strides = [1, 1]} : vector<16x128xf32> to vector<2x128xf32>
    %cst_15 = arith.constant dense<0.000000e+00> : vector<2x128xf32>
    %14 = tpu.matmul %9, %6, %cst_15 {dimension_numbers = #tpu.dot_dimension_numbers<[1], [0], [0], [1], [0, 0, 1, 1], [], []>} : vector<2x32xf32>, vector<32x128xf32>, vector<2x128xf32> -> vector<2x128xf32>
    %15 = arith.addf %13, %14 : vector<2x128xf32>
    %16 = tpu.iota {dimensions = array<i32: 1>} : vector<2x128xi32>
    %c64_i32 = arith.constant 64 : i32
    %17 = vector.broadcast %c64_i32 : i32 to vector<2x128xi32>
    %18 = arith.cmpi sge, %16, %17 : vector<2x128xi32>
    %c96_i32 = arith.constant 96 : i32
    %19 = vector.broadcast %c96_i32 : i32 to vector<2x128xi32>
    %20 = arith.cmpi slt, %16, %19 : vector<2x128xi32>
    %21 = arith.andi %18, %20 : vector<2x128xi1>
    %22 = math.tanh %15 : vector<2x128xf32>
    %23 = arith.negf %15 : vector<2x128xf32>
    %24 = math.exp %23 : vector<2x128xf32>
    %cst_16 = arith.constant 1.000000e+00 : f32
    %25 = vector.broadcast %cst_16 : f32 to vector<2x128xf32>
    %26 = arith.addf %25, %24 : vector<2x128xf32>
    %27 = arith.divf %25, %26 : vector<2x128xf32>
    %28 = arith.select %21, %22, %27 : vector<2x128xi1>, vector<2x128xf32>
    %29 = vector.extract_strided_slice %28 {offsets = [0, 0], sizes = [2, 32], strides = [1, 1]} : vector<2x128xf32> to vector<2x32xf32>
    %30 = vector.extract_strided_slice %28 {offsets = [0, 32], sizes = [2, 32], strides = [1, 1]} : vector<2x128xf32> to vector<2x32xf32>
    %31 = vector.extract_strided_slice %28 {offsets = [0, 64], sizes = [2, 32], strides = [1, 1]} : vector<2x128xf32> to vector<2x32xf32>
    %32 = vector.extract_strided_slice %28 {offsets = [0, 96], sizes = [2, 32], strides = [1, 1]} : vector<2x128xf32> to vector<2x32xf32>
    %33 = arith.mulf %30, %10 : vector<2x32xf32>
    %34 = arith.mulf %29, %31 : vector<2x32xf32>
    %35 = arith.addf %33, %34 : vector<2x32xf32>
    %36 = math.tanh %35 : vector<2x32xf32>
    %37 = arith.mulf %32, %36 : vector<2x32xf32>
    %38 = tpu.concatenate %37, %11 in 1 : vector<2x32xf32>, vector<2x32xf32> -> vector<2x64xf32>
    %cst_17 = arith.constant dense<0.000000e+00> : vector<2x128xf32>
    %39 = tpu.matmul %38, %7, %cst_17 {dimension_numbers = #tpu.dot_dimension_numbers<[1], [0], [0], [1], [0, 0, 1, 1], [], []>} : vector<2x64xf32>, vector<64x128xf32>, vector<2x128xf32> -> vector<2x128xf32>
    %40 = vector.broadcast %8 : vector<1x128xf32> to vector<2x128xf32>
    %41 = arith.addf %39, %40 : vector<2x128xf32>
    %42 = tpu.iota {dimensions = array<i32: 1>} : vector<2x128xi32>
    %c64_i32_18 = arith.constant 64 : i32
    %43 = vector.broadcast %c64_i32_18 : i32 to vector<2x128xi32>
    %44 = arith.cmpi sge, %42, %43 : vector<2x128xi32>
    %c96_i32_19 = arith.constant 96 : i32
    %45 = vector.broadcast %c96_i32_19 : i32 to vector<2x128xi32>
    %46 = arith.cmpi slt, %42, %45 : vector<2x128xi32>
    %47 = arith.andi %44, %46 : vector<2x128xi1>
    %48 = math.tanh %41 : vector<2x128xf32>
    %49 = arith.negf %41 : vector<2x128xf32>
    %50 = math.exp %49 : vector<2x128xf32>
    %cst_20 = arith.constant 1.000000e+00 : f32
    %51 = vector.broadcast %cst_20 : f32 to vector<2x128xf32>
    %52 = arith.addf %51, %50 : vector<2x128xf32>
    %53 = arith.divf %51, %52 : vector<2x128xf32>
    %54 = arith.select %47, %48, %53 : vector<2x128xi1>, vector<2x128xf32>
    %55 = vector.extract_strided_slice %54 {offsets = [0, 0], sizes = [2, 32], strides = [1, 1]} : vector<2x128xf32> to vector<2x32xf32>
    %56 = vector.extract_strided_slice %54 {offsets = [0, 32], sizes = [2, 32], strides = [1, 1]} : vector<2x128xf32> to vector<2x32xf32>
    %57 = vector.extract_strided_slice %54 {offsets = [0, 64], sizes = [2, 32], strides = [1, 1]} : vector<2x128xf32> to vector<2x32xf32>
    %58 = vector.extract_strided_slice %54 {offsets = [0, 96], sizes = [2, 32], strides = [1, 1]} : vector<2x128xf32> to vector<2x32xf32>
    %59 = arith.mulf %56, %12 : vector<2x32xf32>
    %60 = arith.mulf %55, %57 : vector<2x32xf32>
    %61 = arith.addf %59, %60 : vector<2x32xf32>
    %62 = math.tanh %61 : vector<2x32xf32>
    %63 = arith.mulf %58, %62 : vector<2x32xf32>
    %64 = vector.extract_strided_slice %5 {offsets = [2, 0], sizes = [2, 128], strides = [1, 1]} : vector<16x128xf32> to vector<2x128xf32>
    %cst_21 = arith.constant dense<0.000000e+00> : vector<2x128xf32>
    %65 = tpu.matmul %37, %6, %cst_21 {dimension_numbers = #tpu.dot_dimension_numbers<[1], [0], [0], [1], [0, 0, 1, 1], [], []>} : vector<2x32xf32>, vector<32x128xf32>, vector<2x128xf32> -> vector<2x128xf32>
    %66 = arith.addf %64, %65 : vector<2x128xf32>
    %67 = tpu.iota {dimensions = array<i32: 1>} : vector<2x128xi32>
    %c64_i32_22 = arith.constant 64 : i32
    %68 = vector.broadcast %c64_i32_22 : i32 to vector<2x128xi32>
    %69 = arith.cmpi sge, %67, %68 : vector<2x128xi32>
    %c96_i32_23 = arith.constant 96 : i32
    %70 = vector.broadcast %c96_i32_23 : i32 to vector<2x128xi32>
    %71 = arith.cmpi slt, %67, %70 : vector<2x128xi32>
    %72 = arith.andi %69, %71 : vector<2x128xi1>
    %73 = math.tanh %66 : vector<2x128xf32>
    %74 = arith.negf %66 : vector<2x128xf32>
    %75 = math.exp %74 : vector<2x128xf32>
    %cst_24 = arith.constant 1.000000e+00 : f32
    %76 = vector.broadcast %cst_24 : f32 to vector<2x128xf32>
    %77 = arith.addf %76, %75 : vector<2x128xf32>
    %78 = arith.divf %76, %77 : vector<2x128xf32>
    %79 = arith.select %72, %73, %78 : vector<2x128xi1>, vector<2x128xf32>
    %80 = vector.extract_strided_slice %79 {offsets = [0, 0], sizes = [2, 32], strides = [1, 1]} : vector<2x128xf32> to vector<2x32xf32>
    %81 = vector.extract_strided_slice %79 {offsets = [0, 32], sizes = [2, 32], strides = [1, 1]} : vector<2x128xf32> to vector<2x32xf32>
    %82 = vector.extract_strided_slice %79 {offsets = [0, 64], sizes = [2, 32], strides = [1, 1]} : vector<2x128xf32> to vector<2x32xf32>
    %83 = vector.extract_strided_slice %79 {offsets = [0, 96], sizes = [2, 32], strides = [1, 1]} : vector<2x128xf32> to vector<2x32xf32>
    %84 = arith.mulf %81, %35 : vector<2x32xf32>
    %85 = arith.mulf %80, %82 : vector<2x32xf32>
    %86 = arith.addf %84, %85 : vector<2x32xf32>
    %87 = math.tanh %86 : vector<2x32xf32>
    %88 = arith.mulf %83, %87 : vector<2x32xf32>
    %89 = tpu.concatenate %88, %63 in 1 : vector<2x32xf32>, vector<2x32xf32> -> vector<2x64xf32>
    %cst_25 = arith.constant dense<0.000000e+00> : vector<2x128xf32>
    %90 = tpu.matmul %89, %7, %cst_25 {dimension_numbers = #tpu.dot_dimension_numbers<[1], [0], [0], [1], [0, 0, 1, 1], [], []>} : vector<2x64xf32>, vector<64x128xf32>, vector<2x128xf32> -> vector<2x128xf32>
    %91 = vector.broadcast %8 : vector<1x128xf32> to vector<2x128xf32>
    %92 = arith.addf %90, %91 : vector<2x128xf32>
    %93 = tpu.iota {dimensions = array<i32: 1>} : vector<2x128xi32>
    %c64_i32_26 = arith.constant 64 : i32
    %94 = vector.broadcast %c64_i32_26 : i32 to vector<2x128xi32>
    %95 = arith.cmpi sge, %93, %94 : vector<2x128xi32>
    %c96_i32_27 = arith.constant 96 : i32
    %96 = vector.broadcast %c96_i32_27 : i32 to vector<2x128xi32>
    %97 = arith.cmpi slt, %93, %96 : vector<2x128xi32>
    %98 = arith.andi %95, %97 : vector<2x128xi1>
    %99 = math.tanh %92 : vector<2x128xf32>
    %100 = arith.negf %92 : vector<2x128xf32>
    %101 = math.exp %100 : vector<2x128xf32>
    %cst_28 = arith.constant 1.000000e+00 : f32
    %102 = vector.broadcast %cst_28 : f32 to vector<2x128xf32>
    %103 = arith.addf %102, %101 : vector<2x128xf32>
    %104 = arith.divf %102, %103 : vector<2x128xf32>
    %105 = arith.select %98, %99, %104 : vector<2x128xi1>, vector<2x128xf32>
    %106 = vector.extract_strided_slice %105 {offsets = [0, 0], sizes = [2, 32], strides = [1, 1]} : vector<2x128xf32> to vector<2x32xf32>
    %107 = vector.extract_strided_slice %105 {offsets = [0, 32], sizes = [2, 32], strides = [1, 1]} : vector<2x128xf32> to vector<2x32xf32>
    %108 = vector.extract_strided_slice %105 {offsets = [0, 64], sizes = [2, 32], strides = [1, 1]} : vector<2x128xf32> to vector<2x32xf32>
    %109 = vector.extract_strided_slice %105 {offsets = [0, 96], sizes = [2, 32], strides = [1, 1]} : vector<2x128xf32> to vector<2x32xf32>
    %110 = arith.mulf %107, %61 : vector<2x32xf32>
    %111 = arith.mulf %106, %108 : vector<2x32xf32>
    %112 = arith.addf %110, %111 : vector<2x32xf32>
    %113 = math.tanh %112 : vector<2x32xf32>
    %114 = arith.mulf %109, %113 : vector<2x32xf32>
    %115 = vector.extract_strided_slice %5 {offsets = [4, 0], sizes = [2, 128], strides = [1, 1]} : vector<16x128xf32> to vector<2x128xf32>
    %cst_29 = arith.constant dense<0.000000e+00> : vector<2x128xf32>
    %116 = tpu.matmul %88, %6, %cst_29 {dimension_numbers = #tpu.dot_dimension_numbers<[1], [0], [0], [1], [0, 0, 1, 1], [], []>} : vector<2x32xf32>, vector<32x128xf32>, vector<2x128xf32> -> vector<2x128xf32>
    %117 = arith.addf %115, %116 : vector<2x128xf32>
    %118 = tpu.iota {dimensions = array<i32: 1>} : vector<2x128xi32>
    %c64_i32_30 = arith.constant 64 : i32
    %119 = vector.broadcast %c64_i32_30 : i32 to vector<2x128xi32>
    %120 = arith.cmpi sge, %118, %119 : vector<2x128xi32>
    %c96_i32_31 = arith.constant 96 : i32
    %121 = vector.broadcast %c96_i32_31 : i32 to vector<2x128xi32>
    %122 = arith.cmpi slt, %118, %121 : vector<2x128xi32>
    %123 = arith.andi %120, %122 : vector<2x128xi1>
    %124 = math.tanh %117 : vector<2x128xf32>
    %125 = arith.negf %117 : vector<2x128xf32>
    %126 = math.exp %125 : vector<2x128xf32>
    %cst_32 = arith.constant 1.000000e+00 : f32
    %127 = vector.broadcast %cst_32 : f32 to vector<2x128xf32>
    %128 = arith.addf %127, %126 : vector<2x128xf32>
    %129 = arith.divf %127, %128 : vector<2x128xf32>
    %130 = arith.select %123, %124, %129 : vector<2x128xi1>, vector<2x128xf32>
    %131 = vector.extract_strided_slice %130 {offsets = [0, 0], sizes = [2, 32], strides = [1, 1]} : vector<2x128xf32> to vector<2x32xf32>
    %132 = vector.extract_strided_slice %130 {offsets = [0, 32], sizes = [2, 32], strides = [1, 1]} : vector<2x128xf32> to vector<2x32xf32>
    %133 = vector.extract_strided_slice %130 {offsets = [0, 64], sizes = [2, 32], strides = [1, 1]} : vector<2x128xf32> to vector<2x32xf32>
    %134 = vector.extract_strided_slice %130 {offsets = [0, 96], sizes = [2, 32], strides = [1, 1]} : vector<2x128xf32> to vector<2x32xf32>
    %135 = arith.mulf %132, %86 : vector<2x32xf32>
    %136 = arith.mulf %131, %133 : vector<2x32xf32>
    %137 = arith.addf %135, %136 : vector<2x32xf32>
    %138 = math.tanh %137 : vector<2x32xf32>
    %139 = arith.mulf %134, %138 : vector<2x32xf32>
    %140 = tpu.concatenate %139, %114 in 1 : vector<2x32xf32>, vector<2x32xf32> -> vector<2x64xf32>
    %cst_33 = arith.constant dense<0.000000e+00> : vector<2x128xf32>
    %141 = tpu.matmul %140, %7, %cst_33 {dimension_numbers = #tpu.dot_dimension_numbers<[1], [0], [0], [1], [0, 0, 1, 1], [], []>} : vector<2x64xf32>, vector<64x128xf32>, vector<2x128xf32> -> vector<2x128xf32>
    %142 = vector.broadcast %8 : vector<1x128xf32> to vector<2x128xf32>
    %143 = arith.addf %141, %142 : vector<2x128xf32>
    %144 = tpu.iota {dimensions = array<i32: 1>} : vector<2x128xi32>
    %c64_i32_34 = arith.constant 64 : i32
    %145 = vector.broadcast %c64_i32_34 : i32 to vector<2x128xi32>
    %146 = arith.cmpi sge, %144, %145 : vector<2x128xi32>
    %c96_i32_35 = arith.constant 96 : i32
    %147 = vector.broadcast %c96_i32_35 : i32 to vector<2x128xi32>
    %148 = arith.cmpi slt, %144, %147 : vector<2x128xi32>
    %149 = arith.andi %146, %148 : vector<2x128xi1>
    %150 = math.tanh %143 : vector<2x128xf32>
    %151 = arith.negf %143 : vector<2x128xf32>
    %152 = math.exp %151 : vector<2x128xf32>
    %cst_36 = arith.constant 1.000000e+00 : f32
    %153 = vector.broadcast %cst_36 : f32 to vector<2x128xf32>
    %154 = arith.addf %153, %152 : vector<2x128xf32>
    %155 = arith.divf %153, %154 : vector<2x128xf32>
    %156 = arith.select %149, %150, %155 : vector<2x128xi1>, vector<2x128xf32>
    %157 = vector.extract_strided_slice %156 {offsets = [0, 0], sizes = [2, 32], strides = [1, 1]} : vector<2x128xf32> to vector<2x32xf32>
    %158 = vector.extract_strided_slice %156 {offsets = [0, 32], sizes = [2, 32], strides = [1, 1]} : vector<2x128xf32> to vector<2x32xf32>
    %159 = vector.extract_strided_slice %156 {offsets = [0, 64], sizes = [2, 32], strides = [1, 1]} : vector<2x128xf32> to vector<2x32xf32>
    %160 = vector.extract_strided_slice %156 {offsets = [0, 96], sizes = [2, 32], strides = [1, 1]} : vector<2x128xf32> to vector<2x32xf32>
    %161 = arith.mulf %158, %112 : vector<2x32xf32>
    %162 = arith.mulf %157, %159 : vector<2x32xf32>
    %163 = arith.addf %161, %162 : vector<2x32xf32>
    %164 = math.tanh %163 : vector<2x32xf32>
    %165 = arith.mulf %160, %164 : vector<2x32xf32>
    %166 = vector.extract_strided_slice %5 {offsets = [6, 0], sizes = [2, 128], strides = [1, 1]} : vector<16x128xf32> to vector<2x128xf32>
    %cst_37 = arith.constant dense<0.000000e+00> : vector<2x128xf32>
    %167 = tpu.matmul %139, %6, %cst_37 {dimension_numbers = #tpu.dot_dimension_numbers<[1], [0], [0], [1], [0, 0, 1, 1], [], []>} : vector<2x32xf32>, vector<32x128xf32>, vector<2x128xf32> -> vector<2x128xf32>
    %168 = arith.addf %166, %167 : vector<2x128xf32>
    %169 = tpu.iota {dimensions = array<i32: 1>} : vector<2x128xi32>
    %c64_i32_38 = arith.constant 64 : i32
    %170 = vector.broadcast %c64_i32_38 : i32 to vector<2x128xi32>
    %171 = arith.cmpi sge, %169, %170 : vector<2x128xi32>
    %c96_i32_39 = arith.constant 96 : i32
    %172 = vector.broadcast %c96_i32_39 : i32 to vector<2x128xi32>
    %173 = arith.cmpi slt, %169, %172 : vector<2x128xi32>
    %174 = arith.andi %171, %173 : vector<2x128xi1>
    %175 = math.tanh %168 : vector<2x128xf32>
    %176 = arith.negf %168 : vector<2x128xf32>
    %177 = math.exp %176 : vector<2x128xf32>
    %cst_40 = arith.constant 1.000000e+00 : f32
    %178 = vector.broadcast %cst_40 : f32 to vector<2x128xf32>
    %179 = arith.addf %178, %177 : vector<2x128xf32>
    %180 = arith.divf %178, %179 : vector<2x128xf32>
    %181 = arith.select %174, %175, %180 : vector<2x128xi1>, vector<2x128xf32>
    %182 = vector.extract_strided_slice %181 {offsets = [0, 0], sizes = [2, 32], strides = [1, 1]} : vector<2x128xf32> to vector<2x32xf32>
    %183 = vector.extract_strided_slice %181 {offsets = [0, 32], sizes = [2, 32], strides = [1, 1]} : vector<2x128xf32> to vector<2x32xf32>
    %184 = vector.extract_strided_slice %181 {offsets = [0, 64], sizes = [2, 32], strides = [1, 1]} : vector<2x128xf32> to vector<2x32xf32>
    %185 = vector.extract_strided_slice %181 {offsets = [0, 96], sizes = [2, 32], strides = [1, 1]} : vector<2x128xf32> to vector<2x32xf32>
    %186 = arith.mulf %183, %137 : vector<2x32xf32>
    %187 = arith.mulf %182, %184 : vector<2x32xf32>
    %188 = arith.addf %186, %187 : vector<2x32xf32>
    %189 = math.tanh %188 : vector<2x32xf32>
    %190 = arith.mulf %185, %189 : vector<2x32xf32>
    %191 = tpu.concatenate %190, %165 in 1 : vector<2x32xf32>, vector<2x32xf32> -> vector<2x64xf32>
    %cst_41 = arith.constant dense<0.000000e+00> : vector<2x128xf32>
    %192 = tpu.matmul %191, %7, %cst_41 {dimension_numbers = #tpu.dot_dimension_numbers<[1], [0], [0], [1], [0, 0, 1, 1], [], []>} : vector<2x64xf32>, vector<64x128xf32>, vector<2x128xf32> -> vector<2x128xf32>
    %193 = vector.broadcast %8 : vector<1x128xf32> to vector<2x128xf32>
    %194 = arith.addf %192, %193 : vector<2x128xf32>
    %195 = tpu.iota {dimensions = array<i32: 1>} : vector<2x128xi32>
    %c64_i32_42 = arith.constant 64 : i32
    %196 = vector.broadcast %c64_i32_42 : i32 to vector<2x128xi32>
    %197 = arith.cmpi sge, %195, %196 : vector<2x128xi32>
    %c96_i32_43 = arith.constant 96 : i32
    %198 = vector.broadcast %c96_i32_43 : i32 to vector<2x128xi32>
    %199 = arith.cmpi slt, %195, %198 : vector<2x128xi32>
    %200 = arith.andi %197, %199 : vector<2x128xi1>
    %201 = math.tanh %194 : vector<2x128xf32>
    %202 = arith.negf %194 : vector<2x128xf32>
    %203 = math.exp %202 : vector<2x128xf32>
    %cst_44 = arith.constant 1.000000e+00 : f32
    %204 = vector.broadcast %cst_44 : f32 to vector<2x128xf32>
    %205 = arith.addf %204, %203 : vector<2x128xf32>
    %206 = arith.divf %204, %205 : vector<2x128xf32>
    %207 = arith.select %200, %201, %206 : vector<2x128xi1>, vector<2x128xf32>
    %208 = vector.extract_strided_slice %207 {offsets = [0, 0], sizes = [2, 32], strides = [1, 1]} : vector<2x128xf32> to vector<2x32xf32>
    %209 = vector.extract_strided_slice %207 {offsets = [0, 32], sizes = [2, 32], strides = [1, 1]} : vector<2x128xf32> to vector<2x32xf32>
    %210 = vector.extract_strided_slice %207 {offsets = [0, 64], sizes = [2, 32], strides = [1, 1]} : vector<2x128xf32> to vector<2x32xf32>
    %211 = vector.extract_strided_slice %207 {offsets = [0, 96], sizes = [2, 32], strides = [1, 1]} : vector<2x128xf32> to vector<2x32xf32>
    %212 = arith.mulf %209, %163 : vector<2x32xf32>
    %213 = arith.mulf %208, %210 : vector<2x32xf32>
    %214 = arith.addf %212, %213 : vector<2x32xf32>
    %215 = math.tanh %214 : vector<2x32xf32>
    %216 = arith.mulf %211, %215 : vector<2x32xf32>
    %217 = vector.extract_strided_slice %5 {offsets = [8, 0], sizes = [2, 128], strides = [1, 1]} : vector<16x128xf32> to vector<2x128xf32>
    %cst_45 = arith.constant dense<0.000000e+00> : vector<2x128xf32>
    %218 = tpu.matmul %190, %6, %cst_45 {dimension_numbers = #tpu.dot_dimension_numbers<[1], [0], [0], [1], [0, 0, 1, 1], [], []>} : vector<2x32xf32>, vector<32x128xf32>, vector<2x128xf32> -> vector<2x128xf32>
    %219 = arith.addf %217, %218 : vector<2x128xf32>
    %220 = tpu.iota {dimensions = array<i32: 1>} : vector<2x128xi32>
    %c64_i32_46 = arith.constant 64 : i32
    %221 = vector.broadcast %c64_i32_46 : i32 to vector<2x128xi32>
    %222 = arith.cmpi sge, %220, %221 : vector<2x128xi32>
    %c96_i32_47 = arith.constant 96 : i32
    %223 = vector.broadcast %c96_i32_47 : i32 to vector<2x128xi32>
    %224 = arith.cmpi slt, %220, %223 : vector<2x128xi32>
    %225 = arith.andi %222, %224 : vector<2x128xi1>
    %226 = math.tanh %219 : vector<2x128xf32>
    %227 = arith.negf %219 : vector<2x128xf32>
    %228 = math.exp %227 : vector<2x128xf32>
    %cst_48 = arith.constant 1.000000e+00 : f32
    %229 = vector.broadcast %cst_48 : f32 to vector<2x128xf32>
    %230 = arith.addf %229, %228 : vector<2x128xf32>
    %231 = arith.divf %229, %230 : vector<2x128xf32>
    %232 = arith.select %225, %226, %231 : vector<2x128xi1>, vector<2x128xf32>
    %233 = vector.extract_strided_slice %232 {offsets = [0, 0], sizes = [2, 32], strides = [1, 1]} : vector<2x128xf32> to vector<2x32xf32>
    %234 = vector.extract_strided_slice %232 {offsets = [0, 32], sizes = [2, 32], strides = [1, 1]} : vector<2x128xf32> to vector<2x32xf32>
    %235 = vector.extract_strided_slice %232 {offsets = [0, 64], sizes = [2, 32], strides = [1, 1]} : vector<2x128xf32> to vector<2x32xf32>
    %236 = vector.extract_strided_slice %232 {offsets = [0, 96], sizes = [2, 32], strides = [1, 1]} : vector<2x128xf32> to vector<2x32xf32>
    %237 = arith.mulf %234, %188 : vector<2x32xf32>
    %238 = arith.mulf %233, %235 : vector<2x32xf32>
    %239 = arith.addf %237, %238 : vector<2x32xf32>
    %240 = math.tanh %239 : vector<2x32xf32>
    %241 = arith.mulf %236, %240 : vector<2x32xf32>
    %242 = tpu.concatenate %241, %216 in 1 : vector<2x32xf32>, vector<2x32xf32> -> vector<2x64xf32>
    %cst_49 = arith.constant dense<0.000000e+00> : vector<2x128xf32>
    %243 = tpu.matmul %242, %7, %cst_49 {dimension_numbers = #tpu.dot_dimension_numbers<[1], [0], [0], [1], [0, 0, 1, 1], [], []>} : vector<2x64xf32>, vector<64x128xf32>, vector<2x128xf32> -> vector<2x128xf32>
    %244 = vector.broadcast %8 : vector<1x128xf32> to vector<2x128xf32>
    %245 = arith.addf %243, %244 : vector<2x128xf32>
    %246 = tpu.iota {dimensions = array<i32: 1>} : vector<2x128xi32>
    %c64_i32_50 = arith.constant 64 : i32
    %247 = vector.broadcast %c64_i32_50 : i32 to vector<2x128xi32>
    %248 = arith.cmpi sge, %246, %247 : vector<2x128xi32>
    %c96_i32_51 = arith.constant 96 : i32
    %249 = vector.broadcast %c96_i32_51 : i32 to vector<2x128xi32>
    %250 = arith.cmpi slt, %246, %249 : vector<2x128xi32>
    %251 = arith.andi %248, %250 : vector<2x128xi1>
    %252 = math.tanh %245 : vector<2x128xf32>
    %253 = arith.negf %245 : vector<2x128xf32>
    %254 = math.exp %253 : vector<2x128xf32>
    %cst_52 = arith.constant 1.000000e+00 : f32
    %255 = vector.broadcast %cst_52 : f32 to vector<2x128xf32>
    %256 = arith.addf %255, %254 : vector<2x128xf32>
    %257 = arith.divf %255, %256 : vector<2x128xf32>
    %258 = arith.select %251, %252, %257 : vector<2x128xi1>, vector<2x128xf32>
    %259 = vector.extract_strided_slice %258 {offsets = [0, 0], sizes = [2, 32], strides = [1, 1]} : vector<2x128xf32> to vector<2x32xf32>
    %260 = vector.extract_strided_slice %258 {offsets = [0, 32], sizes = [2, 32], strides = [1, 1]} : vector<2x128xf32> to vector<2x32xf32>
    %261 = vector.extract_strided_slice %258 {offsets = [0, 64], sizes = [2, 32], strides = [1, 1]} : vector<2x128xf32> to vector<2x32xf32>
    %262 = vector.extract_strided_slice %258 {offsets = [0, 96], sizes = [2, 32], strides = [1, 1]} : vector<2x128xf32> to vector<2x32xf32>
    %263 = arith.mulf %260, %214 : vector<2x32xf32>
    %264 = arith.mulf %259, %261 : vector<2x32xf32>
    %265 = arith.addf %263, %264 : vector<2x32xf32>
    %266 = math.tanh %265 : vector<2x32xf32>
    %267 = arith.mulf %262, %266 : vector<2x32xf32>
    %268 = vector.extract_strided_slice %5 {offsets = [10, 0], sizes = [2, 128], strides = [1, 1]} : vector<16x128xf32> to vector<2x128xf32>
    %cst_53 = arith.constant dense<0.000000e+00> : vector<2x128xf32>
    %269 = tpu.matmul %241, %6, %cst_53 {dimension_numbers = #tpu.dot_dimension_numbers<[1], [0], [0], [1], [0, 0, 1, 1], [], []>} : vector<2x32xf32>, vector<32x128xf32>, vector<2x128xf32> -> vector<2x128xf32>
    %270 = arith.addf %268, %269 : vector<2x128xf32>
    %271 = tpu.iota {dimensions = array<i32: 1>} : vector<2x128xi32>
    %c64_i32_54 = arith.constant 64 : i32
    %272 = vector.broadcast %c64_i32_54 : i32 to vector<2x128xi32>
    %273 = arith.cmpi sge, %271, %272 : vector<2x128xi32>
    %c96_i32_55 = arith.constant 96 : i32
    %274 = vector.broadcast %c96_i32_55 : i32 to vector<2x128xi32>
    %275 = arith.cmpi slt, %271, %274 : vector<2x128xi32>
    %276 = arith.andi %273, %275 : vector<2x128xi1>
    %277 = math.tanh %270 : vector<2x128xf32>
    %278 = arith.negf %270 : vector<2x128xf32>
    %279 = math.exp %278 : vector<2x128xf32>
    %cst_56 = arith.constant 1.000000e+00 : f32
    %280 = vector.broadcast %cst_56 : f32 to vector<2x128xf32>
    %281 = arith.addf %280, %279 : vector<2x128xf32>
    %282 = arith.divf %280, %281 : vector<2x128xf32>
    %283 = arith.select %276, %277, %282 : vector<2x128xi1>, vector<2x128xf32>
    %284 = vector.extract_strided_slice %283 {offsets = [0, 0], sizes = [2, 32], strides = [1, 1]} : vector<2x128xf32> to vector<2x32xf32>
    %285 = vector.extract_strided_slice %283 {offsets = [0, 32], sizes = [2, 32], strides = [1, 1]} : vector<2x128xf32> to vector<2x32xf32>
    %286 = vector.extract_strided_slice %283 {offsets = [0, 64], sizes = [2, 32], strides = [1, 1]} : vector<2x128xf32> to vector<2x32xf32>
    %287 = vector.extract_strided_slice %283 {offsets = [0, 96], sizes = [2, 32], strides = [1, 1]} : vector<2x128xf32> to vector<2x32xf32>
    %288 = arith.mulf %285, %239 : vector<2x32xf32>
    %289 = arith.mulf %284, %286 : vector<2x32xf32>
    %290 = arith.addf %288, %289 : vector<2x32xf32>
    %291 = math.tanh %290 : vector<2x32xf32>
    %292 = arith.mulf %287, %291 : vector<2x32xf32>
    %293 = tpu.concatenate %292, %267 in 1 : vector<2x32xf32>, vector<2x32xf32> -> vector<2x64xf32>
    %cst_57 = arith.constant dense<0.000000e+00> : vector<2x128xf32>
    %294 = tpu.matmul %293, %7, %cst_57 {dimension_numbers = #tpu.dot_dimension_numbers<[1], [0], [0], [1], [0, 0, 1, 1], [], []>} : vector<2x64xf32>, vector<64x128xf32>, vector<2x128xf32> -> vector<2x128xf32>
    %295 = vector.broadcast %8 : vector<1x128xf32> to vector<2x128xf32>
    %296 = arith.addf %294, %295 : vector<2x128xf32>
    %297 = tpu.iota {dimensions = array<i32: 1>} : vector<2x128xi32>
    %c64_i32_58 = arith.constant 64 : i32
    %298 = vector.broadcast %c64_i32_58 : i32 to vector<2x128xi32>
    %299 = arith.cmpi sge, %297, %298 : vector<2x128xi32>
    %c96_i32_59 = arith.constant 96 : i32
    %300 = vector.broadcast %c96_i32_59 : i32 to vector<2x128xi32>
    %301 = arith.cmpi slt, %297, %300 : vector<2x128xi32>
    %302 = arith.andi %299, %301 : vector<2x128xi1>
    %303 = math.tanh %296 : vector<2x128xf32>
    %304 = arith.negf %296 : vector<2x128xf32>
    %305 = math.exp %304 : vector<2x128xf32>
    %cst_60 = arith.constant 1.000000e+00 : f32
    %306 = vector.broadcast %cst_60 : f32 to vector<2x128xf32>
    %307 = arith.addf %306, %305 : vector<2x128xf32>
    %308 = arith.divf %306, %307 : vector<2x128xf32>
    %309 = arith.select %302, %303, %308 : vector<2x128xi1>, vector<2x128xf32>
    %310 = vector.extract_strided_slice %309 {offsets = [0, 0], sizes = [2, 32], strides = [1, 1]} : vector<2x128xf32> to vector<2x32xf32>
    %311 = vector.extract_strided_slice %309 {offsets = [0, 32], sizes = [2, 32], strides = [1, 1]} : vector<2x128xf32> to vector<2x32xf32>
    %312 = vector.extract_strided_slice %309 {offsets = [0, 64], sizes = [2, 32], strides = [1, 1]} : vector<2x128xf32> to vector<2x32xf32>
    %313 = vector.extract_strided_slice %309 {offsets = [0, 96], sizes = [2, 32], strides = [1, 1]} : vector<2x128xf32> to vector<2x32xf32>
    %314 = arith.mulf %311, %265 : vector<2x32xf32>
    %315 = arith.mulf %310, %312 : vector<2x32xf32>
    %316 = arith.addf %314, %315 : vector<2x32xf32>
    %317 = math.tanh %316 : vector<2x32xf32>
    %318 = arith.mulf %313, %317 : vector<2x32xf32>
    %319 = vector.extract_strided_slice %5 {offsets = [12, 0], sizes = [2, 128], strides = [1, 1]} : vector<16x128xf32> to vector<2x128xf32>
    %cst_61 = arith.constant dense<0.000000e+00> : vector<2x128xf32>
    %320 = tpu.matmul %292, %6, %cst_61 {dimension_numbers = #tpu.dot_dimension_numbers<[1], [0], [0], [1], [0, 0, 1, 1], [], []>} : vector<2x32xf32>, vector<32x128xf32>, vector<2x128xf32> -> vector<2x128xf32>
    %321 = arith.addf %319, %320 : vector<2x128xf32>
    %322 = tpu.iota {dimensions = array<i32: 1>} : vector<2x128xi32>
    %c64_i32_62 = arith.constant 64 : i32
    %323 = vector.broadcast %c64_i32_62 : i32 to vector<2x128xi32>
    %324 = arith.cmpi sge, %322, %323 : vector<2x128xi32>
    %c96_i32_63 = arith.constant 96 : i32
    %325 = vector.broadcast %c96_i32_63 : i32 to vector<2x128xi32>
    %326 = arith.cmpi slt, %322, %325 : vector<2x128xi32>
    %327 = arith.andi %324, %326 : vector<2x128xi1>
    %328 = math.tanh %321 : vector<2x128xf32>
    %329 = arith.negf %321 : vector<2x128xf32>
    %330 = math.exp %329 : vector<2x128xf32>
    %cst_64 = arith.constant 1.000000e+00 : f32
    %331 = vector.broadcast %cst_64 : f32 to vector<2x128xf32>
    %332 = arith.addf %331, %330 : vector<2x128xf32>
    %333 = arith.divf %331, %332 : vector<2x128xf32>
    %334 = arith.select %327, %328, %333 : vector<2x128xi1>, vector<2x128xf32>
    %335 = vector.extract_strided_slice %334 {offsets = [0, 0], sizes = [2, 32], strides = [1, 1]} : vector<2x128xf32> to vector<2x32xf32>
    %336 = vector.extract_strided_slice %334 {offsets = [0, 32], sizes = [2, 32], strides = [1, 1]} : vector<2x128xf32> to vector<2x32xf32>
    %337 = vector.extract_strided_slice %334 {offsets = [0, 64], sizes = [2, 32], strides = [1, 1]} : vector<2x128xf32> to vector<2x32xf32>
    %338 = vector.extract_strided_slice %334 {offsets = [0, 96], sizes = [2, 32], strides = [1, 1]} : vector<2x128xf32> to vector<2x32xf32>
    %339 = arith.mulf %336, %290 : vector<2x32xf32>
    %340 = arith.mulf %335, %337 : vector<2x32xf32>
    %341 = arith.addf %339, %340 : vector<2x32xf32>
    %342 = math.tanh %341 : vector<2x32xf32>
    %343 = arith.mulf %338, %342 : vector<2x32xf32>
    %344 = tpu.concatenate %343, %318 in 1 : vector<2x32xf32>, vector<2x32xf32> -> vector<2x64xf32>
    %cst_65 = arith.constant dense<0.000000e+00> : vector<2x128xf32>
    %345 = tpu.matmul %344, %7, %cst_65 {dimension_numbers = #tpu.dot_dimension_numbers<[1], [0], [0], [1], [0, 0, 1, 1], [], []>} : vector<2x64xf32>, vector<64x128xf32>, vector<2x128xf32> -> vector<2x128xf32>
    %346 = vector.broadcast %8 : vector<1x128xf32> to vector<2x128xf32>
    %347 = arith.addf %345, %346 : vector<2x128xf32>
    %348 = tpu.iota {dimensions = array<i32: 1>} : vector<2x128xi32>
    %c64_i32_66 = arith.constant 64 : i32
    %349 = vector.broadcast %c64_i32_66 : i32 to vector<2x128xi32>
    %350 = arith.cmpi sge, %348, %349 : vector<2x128xi32>
    %c96_i32_67 = arith.constant 96 : i32
    %351 = vector.broadcast %c96_i32_67 : i32 to vector<2x128xi32>
    %352 = arith.cmpi slt, %348, %351 : vector<2x128xi32>
    %353 = arith.andi %350, %352 : vector<2x128xi1>
    %354 = math.tanh %347 : vector<2x128xf32>
    %355 = arith.negf %347 : vector<2x128xf32>
    %356 = math.exp %355 : vector<2x128xf32>
    %cst_68 = arith.constant 1.000000e+00 : f32
    %357 = vector.broadcast %cst_68 : f32 to vector<2x128xf32>
    %358 = arith.addf %357, %356 : vector<2x128xf32>
    %359 = arith.divf %357, %358 : vector<2x128xf32>
    %360 = arith.select %353, %354, %359 : vector<2x128xi1>, vector<2x128xf32>
    %361 = vector.extract_strided_slice %360 {offsets = [0, 0], sizes = [2, 32], strides = [1, 1]} : vector<2x128xf32> to vector<2x32xf32>
    %362 = vector.extract_strided_slice %360 {offsets = [0, 32], sizes = [2, 32], strides = [1, 1]} : vector<2x128xf32> to vector<2x32xf32>
    %363 = vector.extract_strided_slice %360 {offsets = [0, 64], sizes = [2, 32], strides = [1, 1]} : vector<2x128xf32> to vector<2x32xf32>
    %364 = vector.extract_strided_slice %360 {offsets = [0, 96], sizes = [2, 32], strides = [1, 1]} : vector<2x128xf32> to vector<2x32xf32>
    %365 = arith.mulf %362, %316 : vector<2x32xf32>
    %366 = arith.mulf %361, %363 : vector<2x32xf32>
    %367 = arith.addf %365, %366 : vector<2x32xf32>
    %368 = math.tanh %367 : vector<2x32xf32>
    %369 = arith.mulf %364, %368 : vector<2x32xf32>
    %370 = vector.extract_strided_slice %5 {offsets = [14, 0], sizes = [2, 128], strides = [1, 1]} : vector<16x128xf32> to vector<2x128xf32>
    %cst_69 = arith.constant dense<0.000000e+00> : vector<2x128xf32>
    %371 = tpu.matmul %343, %6, %cst_69 {dimension_numbers = #tpu.dot_dimension_numbers<[1], [0], [0], [1], [0, 0, 1, 1], [], []>} : vector<2x32xf32>, vector<32x128xf32>, vector<2x128xf32> -> vector<2x128xf32>
    %372 = arith.addf %370, %371 : vector<2x128xf32>
    %373 = tpu.iota {dimensions = array<i32: 1>} : vector<2x128xi32>
    %c64_i32_70 = arith.constant 64 : i32
    %374 = vector.broadcast %c64_i32_70 : i32 to vector<2x128xi32>
    %375 = arith.cmpi sge, %373, %374 : vector<2x128xi32>
    %c96_i32_71 = arith.constant 96 : i32
    %376 = vector.broadcast %c96_i32_71 : i32 to vector<2x128xi32>
    %377 = arith.cmpi slt, %373, %376 : vector<2x128xi32>
    %378 = arith.andi %375, %377 : vector<2x128xi1>
    %379 = math.tanh %372 : vector<2x128xf32>
    %380 = arith.negf %372 : vector<2x128xf32>
    %381 = math.exp %380 : vector<2x128xf32>
    %cst_72 = arith.constant 1.000000e+00 : f32
    %382 = vector.broadcast %cst_72 : f32 to vector<2x128xf32>
    %383 = arith.addf %382, %381 : vector<2x128xf32>
    %384 = arith.divf %382, %383 : vector<2x128xf32>
    %385 = arith.select %378, %379, %384 : vector<2x128xi1>, vector<2x128xf32>
    %386 = vector.extract_strided_slice %385 {offsets = [0, 0], sizes = [2, 32], strides = [1, 1]} : vector<2x128xf32> to vector<2x32xf32>
    %387 = vector.extract_strided_slice %385 {offsets = [0, 32], sizes = [2, 32], strides = [1, 1]} : vector<2x128xf32> to vector<2x32xf32>
    %388 = vector.extract_strided_slice %385 {offsets = [0, 64], sizes = [2, 32], strides = [1, 1]} : vector<2x128xf32> to vector<2x32xf32>
    %389 = vector.extract_strided_slice %385 {offsets = [0, 96], sizes = [2, 32], strides = [1, 1]} : vector<2x128xf32> to vector<2x32xf32>
    %390 = arith.mulf %387, %341 : vector<2x32xf32>
    %391 = arith.mulf %386, %388 : vector<2x32xf32>
    %392 = arith.addf %390, %391 : vector<2x32xf32>
    %393 = math.tanh %392 : vector<2x32xf32>
    %394 = arith.mulf %389, %393 : vector<2x32xf32>
    %395 = tpu.concatenate %394, %369 in 1 : vector<2x32xf32>, vector<2x32xf32> -> vector<2x64xf32>
    %cst_73 = arith.constant dense<0.000000e+00> : vector<2x128xf32>
    %396 = tpu.matmul %395, %7, %cst_73 {dimension_numbers = #tpu.dot_dimension_numbers<[1], [0], [0], [1], [0, 0, 1, 1], [], []>} : vector<2x64xf32>, vector<64x128xf32>, vector<2x128xf32> -> vector<2x128xf32>
    %397 = vector.broadcast %8 : vector<1x128xf32> to vector<2x128xf32>
    %398 = arith.addf %396, %397 : vector<2x128xf32>
    %399 = tpu.iota {dimensions = array<i32: 1>} : vector<2x128xi32>
    %c64_i32_74 = arith.constant 64 : i32
    %400 = vector.broadcast %c64_i32_74 : i32 to vector<2x128xi32>
    %401 = arith.cmpi sge, %399, %400 : vector<2x128xi32>
    %c96_i32_75 = arith.constant 96 : i32
    %402 = vector.broadcast %c96_i32_75 : i32 to vector<2x128xi32>
    %403 = arith.cmpi slt, %399, %402 : vector<2x128xi32>
    %404 = arith.andi %401, %403 : vector<2x128xi1>
    %405 = math.tanh %398 : vector<2x128xf32>
    %406 = arith.negf %398 : vector<2x128xf32>
    %407 = math.exp %406 : vector<2x128xf32>
    %cst_76 = arith.constant 1.000000e+00 : f32
    %408 = vector.broadcast %cst_76 : f32 to vector<2x128xf32>
    %409 = arith.addf %408, %407 : vector<2x128xf32>
    %410 = arith.divf %408, %409 : vector<2x128xf32>
    %411 = arith.select %404, %405, %410 : vector<2x128xi1>, vector<2x128xf32>
    %412 = vector.extract_strided_slice %411 {offsets = [0, 0], sizes = [2, 32], strides = [1, 1]} : vector<2x128xf32> to vector<2x32xf32>
    %413 = vector.extract_strided_slice %411 {offsets = [0, 32], sizes = [2, 32], strides = [1, 1]} : vector<2x128xf32> to vector<2x32xf32>
    %414 = vector.extract_strided_slice %411 {offsets = [0, 64], sizes = [2, 32], strides = [1, 1]} : vector<2x128xf32> to vector<2x32xf32>
    %415 = vector.extract_strided_slice %411 {offsets = [0, 96], sizes = [2, 32], strides = [1, 1]} : vector<2x128xf32> to vector<2x32xf32>
    %416 = arith.mulf %413, %367 : vector<2x32xf32>
    %417 = arith.mulf %412, %414 : vector<2x32xf32>
    %418 = arith.addf %416, %417 : vector<2x32xf32>
    %419 = math.tanh %418 : vector<2x32xf32>
    %420 = arith.mulf %415, %419 : vector<2x32xf32>
    %421 = tpu.concatenate %63, %114, %165, %216, %267, %318, %369, %420 in 1 : vector<2x32xf32>, vector<2x32xf32>, vector<2x32xf32>, vector<2x32xf32>, vector<2x32xf32>, vector<2x32xf32>, vector<2x32xf32>, vector<2x32xf32> -> vector<2x256xf32>
    %c0_77 = arith.constant 0 : index
    %c0_78 = arith.constant 0 : index
    %422 = vector.load %arg6[%c0_77, %c0_78] : memref<256x4xf32, #tpu.memory_space<vmem>>, vector<256x4xf32>
    %cst_79 = arith.constant dense<0.000000e+00> : vector<2x4xf32>
    %423 = tpu.matmul %421, %422, %cst_79 {dimension_numbers = #tpu.dot_dimension_numbers<[1], [0], [0], [1], [0, 0, 1, 1], [], []>} : vector<2x256xf32>, vector<256x4xf32>, vector<2x4xf32> -> vector<2x4xf32>
    %c0_80 = arith.constant 0 : index
    %c0_81 = arith.constant 0 : index
    %424 = vector.load %arg7[%c0_80, %c0_81] : memref<1x4xf32, #tpu.memory_space<vmem>>, vector<1x4xf32>
    %425 = vector.broadcast %424 : vector<1x4xf32> to vector<2x4xf32>
    %426 = arith.addf %423, %425 : vector<2x4xf32>
    %c0_82 = arith.constant 0 : index
    %c0_83 = arith.constant 0 : index
    %427 = vector.load %arg8[%c0_82, %c0_83] : memref<2x4xf32, #tpu.memory_space<vmem>>, vector<2x4xf32>
    tpu.vector_store %arg8[%c0_82, %c0_83], %426 {strides = array<i32>} : memref<2x4xf32, #tpu.memory_space<vmem>>, vector<2x4xf32>,
    return
  }
}

</mosaic_0001>

<llo_original>
// kernel: tpu_custom_call.1
$region0: #{tpu_custom_call.1}
  #allocation0 [shape = 'u32[]', space=smem, size = 0x4, offset = 0x4, fixed_abs, tag = 'smem constant byte address 0x4 - core index']
  #allocation1 [shape = 'u32[144,128]{1,0:T(1,128)}', space=vmem, size = 0x12000, scoped, tag = 'internal scratch']
  %s0 = inlined_call_operand.vmem [shape: f32[16,32], index: 0, kind: input, shape index: {}]
  %s1 = inlined_call_operand.vmem [shape: f32[32,128], index: 1, kind: input, shape index: {}]
  %s2 = inlined_call_operand.vmem [shape: f32[1,128], index: 2, kind: input, shape index: {}]
  %s3 = inlined_call_operand.vmem [shape: f32[32,128], index: 3, kind: input, shape index: {}]
  %s4 = inlined_call_operand.vmem [shape: f32[64,128], index: 4, kind: input, shape index: {}]
  %s5 = inlined_call_operand.vmem [shape: f32[1,128], index: 5, kind: input, shape index: {}]
  %s6 = inlined_call_operand.vmem [shape: f32[256,4], index: 6, kind: input, shape index: {}]
  %s7 = inlined_call_operand.vmem [shape: f32[1,4], index: 7, kind: input, shape index: {}]
  %s8 = inlined_call_operand.hbm [shape: f32[2,4], index: 8, kind: output, shape index: {}]
  %s9 = sld [smem:[#allocation0]]
  $region42: #{tpu_custom_call.1} parent=0
    _
  %s11 = ssub.s32 1, %s9
  %s12 = scalar_select 0, %s11, %s9
  $region1: #{tpu_custom_call.1} parent=0
    #allocation2 [shape = 'u8[1024]{0}', space=vmem, size = 0x400, scoped, tag = 'output window, operand 0, single buffered']
    #allocation3 [shape = 's32[1]{0}', space=sflag, size = 0x4, scoped, tag = 'scoped memory for tpu_custom_call.1']
    %13 = vsyncpa [#allocation3], 0
    // Predicated region
    $region2: #{tpu_custom_call.1} parent=1 // pred_check
      _
    $region3: #{tpu_custom_call.1} parent=1 // pred_check_branch
      %15 = sbr.rel (0) target = $region5
    $region4: #{tpu_custom_call.1} parent=1 // pred_region
      _
    $region5: #{tpu_custom_call.1} parent=1 // pred_fallthru
      _
    // Predicated region
    $region6: #{tpu_custom_call.1} parent=1 // pred_check
      _
    $region7: #{tpu_custom_call.1} parent=1 // pred_check_branch
      %17 = sbr.rel (0) target = $region9
    $region8: #{tpu_custom_call.1} parent=1 // pred_region
      _
    $region9: #{tpu_custom_call.1} parent=1 // pred_fallthru
      _
    // Predicated region
    $region10: #{tpu_custom_call.1} parent=1 // pred_check
      _
    $region11: #{tpu_custom_call.1} parent=1 // pred_check_branch
      %19 = sbr.rel (0) target = $region13
    $region12: #{tpu_custom_call.1} parent=1 // pred_region
      _
    $region13: #{tpu_custom_call.1} parent=1 // pred_fallthru
      _
    // Predicated region
    $region14: #{tpu_custom_call.1} parent=1 // pred_check
      _
    $region15: #{tpu_custom_call.1} parent=1 // pred_check_branch
      %21 = sbr.rel (0) target = $region17
    $region16: #{tpu_custom_call.1} parent=1 // pred_region
      _
    $region17: #{tpu_custom_call.1} parent=1 // pred_fallthru
      _
    // Predicated region
    $region18: #{tpu_custom_call.1} parent=1 // pred_check
      _
    $region19: #{tpu_custom_call.1} parent=1 // pred_check_branch
      %23 = sbr.rel (0) target = $region21
    $region20: #{tpu_custom_call.1} parent=1 // pred_region
      _
    $region21: #{tpu_custom_call.1} parent=1 // pred_fallthru
      _
    // Predicated region
    $region22: #{tpu_custom_call.1} parent=1 // pred_check
      _
    $region23: #{tpu_custom_call.1} parent=1 // pred_check_branch
      %25 = sbr.rel (0) target = $region25
    $region24: #{tpu_custom_call.1} parent=1 // pred_region
      _
    $region25: #{tpu_custom_call.1} parent=1 // pred_fallthru
      _
    // Predicated region
    $region26: #{tpu_custom_call.1} parent=1 // pred_check
      _
    $region27: #{tpu_custom_call.1} parent=1 // pred_check_branch
      %27 = sbr.rel (0) target = $region29
    $region28: #{tpu_custom_call.1} parent=1 // pred_region
      _
    $region29: #{tpu_custom_call.1} parent=1 // pred_fallthru
      _
    // Predicated region
    $region30: #{tpu_custom_call.1} parent=1 // pred_check
      _
    $region31: #{tpu_custom_call.1} parent=1 // pred_check_branch
      %29 = sbr.rel (0) target = $region33
    $region32: #{tpu_custom_call.1} parent=1 // pred_region
      _
    $region33: #{tpu_custom_call.1} parent=1 // pred_fallthru
      _
    %v30 = vld [vmem:[%s0] sm:$0xff]
    %v31 = vld [vmem:[%s0 + $0x8] sm:$0xff]
    %v32 = vld [vmem:[%s1] sm:$0xff]
    %v33 = vld [vmem:[%s1 + $0x8] sm:$0xff]
    %v34 = vld [vmem:[%s1 + $0x10] sm:$0xff]
    %v35 = vld [vmem:[%s1 + $0x18] sm:$0xff]
    %v36 = vld [vmem:[%s2] sm:$0x1]
    %v38 = vlaneseq
    %v39 = vshrl.u32 %v38, 7
    %v40 = vsub.s32 0, %v39
    %v41 = vrot.slane %v36, %v40
    %vm43 = vcmask 261120
    %v45 = vsel %vm43, %v30, 0
    %v48 = vsel %vm43, %v31, 0
    %50 = vmatprep.subr.mxu0 0.0
    %51 = vmatpush1.msra.mxu0 0.0
    %52 = vmatprep.subr.mxu0 0.0
    %53 = vmatpush1.msra.mxu0 0.0
    %54 = vmatprep.subr.mxu0 0.0
    %55 = vmatpush1.msra.mxu0 0.0
    %56 = vmatprep.subr.mxu0 0.0
    %57 = vmatpush1.msra.mxu0 0.0
    %58 = vmatprep.subr.mxu0 0.0
    %59 = vmatpush1.msra.mxu0 0.0
    %60 = vmatprep.subr.mxu0 0.0
    %61 = vmatpush1.msra.mxu0 0.0
    %62 = vmatprep.subr.mxu0 0.0
    %63 = vmatpush1.msra.mxu0 0.0
    %64 = vmatprep.subr.mxu0 0.0
    %65 = vmatpush1.msra.mxu0 0.0
    %66 = vmatprep.subr.mxu0 0.0
    %67 = vmatpush1.msra.mxu0 0.0
    %68 = vmatprep.subr.mxu0 0.0
    %69 = vmatpush1.msra.mxu0 0.0
    %70 = vmatprep.subr.mxu0 0.0
    %71 = vmatpush1.msra.mxu0 0.0
    %72 = vmatprep.subr.mxu0 0.0
    %73 = vmatpush1.msra.mxu0 0.0
    %74 = vmatprep.subr.mxu0 0.0
    %75 = vmatpush1.msra.mxu0 %v35
    %76 = vmatprep.subr.mxu0 0.0
    %77 = vmatpush1.msra.mxu0 %v34
    %78 = vmatprep.subr.mxu0 0.0
    %79 = vmatpush1.msra.mxu0 %v33
    %80 = vmatprep.subr.mxu0 0.0
    %81 = vmatpush1.msra.mxu0 %v32
    %82 = vmatprep.subr.mxu0 0.0
    %83 = vmatpush2.msra.mxu0 0.0
    %84 = vmatprep.subr.mxu0 0.0
    %85 = vmatpush2.msra.mxu0 0.0
    %86 = vmatprep.subr.mxu0 0.0
    %87 = vmatpush2.msra.mxu0 0.0
    %88 = vmatprep.subr.mxu0 0.0
    %89 = vmatpush2.msra.mxu0 0.0
    %90 = vmatprep.subr.mxu0 0.0
    %91 = vmatpush2.msra.mxu0 0.0
    %92 = vmatprep.subr.mxu0 0.0
    %93 = vmatpush2.msra.mxu0 0.0
    %94 = vmatprep.subr.mxu0 0.0
    %95 = vmatpush2.msra.mxu0 0.0
    %96 = vmatprep.subr.mxu0 0.0
    %97 = vmatpush2.msra.mxu0 0.0
    %98 = vmatprep.subr.mxu0 0.0
    %99 = vmatpush2.msra.mxu0 0.0
    %100 = vmatprep.subr.mxu0 0.0
    %101 = vmatpush2.msra.mxu0 0.0
    %102 = vmatprep.subr.mxu0 0.0
    %103 = vmatpush2.msra.mxu0 0.0
    %104 = vmatprep.subr.mxu0 0.0
    %105 = vmatpush2.msra.mxu0 0.0
    %106 = vmatprep.subr.mxu0 0.0
    %107 = vmatpush2.msra.mxu0 0.0
    %108 = vmatprep.subr.mxu0 0.0
    %109 = vmatpush2.msra.mxu0 0.0
    %110 = vmatprep.subr.mxu0 0.0
    %111 = vmatpush2.msra.mxu0 0.0
    %112 = vmatprep.subr.mxu0 0.0
    %113 = vmatpush2.msra.mxu0 0.0
    %114 = vmatprep.mubr.f32.mxu0 0.0
    %115 = vmatmul.mubr.f32.gmra.mxu0 %v45
    %v116 = vpop.f32.mrf.mxu0
    %v117 = vadd.f32 %v41, %v116
    %v118 = vpop.f32.mrf.mxu0
    %119 = vmatprep.mubr.f32.mxu0 0.0
    %120 = vmatmul.mubr.f32.gmra.mxu0 %v48
    %v121 = vpop.f32.mrf.mxu0
    %v122 = vadd.f32 %v41, %v121
    %v123 = vpop.f32.mrf.mxu0
    %124 = vdwg.mxu0
    %v125 = vld [vmem:[%s3] sm:$0xff]
    %v126 = vld [vmem:[%s3 + $0x8] sm:$0xff]
    %v127 = vld [vmem:[%s3 + $0x10] sm:$0xff]
    %v128 = vld [vmem:[%s3 + $0x18] sm:$0xff]
    %v129 = vld [vmem:[%s4] sm:$0xff]
    %v130 = vld [vmem:[%s4 + $0x8] sm:$0xff]
    %v131 = vld [vmem:[%s4 + $0x10] sm:$0xff]
    %v132 = vld [vmem:[%s4 + $0x18] sm:$0xff]
    %v133 = vld [vmem:[%s4 + $0x20] sm:$0xff]
    %v134 = vld [vmem:[%s4 + $0x28] sm:$0xff]
    %v135 = vld [vmem:[%s4 + $0x30] sm:$0xff]
    %v136 = vld [vmem:[%s4 + $0x38] sm:$0xff]
    %v137 = vld [vmem:[%s5] sm:$0x1]
    %v139 = vsel %vm43, 0.0, 0
    %141 = vmatprep.subr.mxu0 0.0
    %142 = vmatpush1.msra.mxu0 0.0
    %143 = vmatprep.subr.mxu0 0.0
    %144 = vmatpush1.msra.mxu0 0.0
    %145 = vmatprep.subr.mxu0 0.0
    %146 = vmatpush1.msra.mxu0 0.0
    %147 = vmatprep.subr.mxu0 0.0
    %148 = vmatpush1.msra.mxu0 0.0
    %149 = vmatprep.subr.mxu0 0.0
    %150 = vmatpush1.msra.mxu0 0.0
    %151 = vmatprep.subr.mxu0 0.0
    %152 = vmatpush1.msra.mxu0 0.0
    %153 = vmatprep.subr.mxu0 0.0
    %154 = vmatpush1.msra.mxu0 0.0
    %155 = vmatprep.subr.mxu0 0.0
    %156 = vmatpush1.msra.mxu0 0.0
    %157 = vmatprep.subr.mxu0 0.0
    %158 = vmatpush1.msra.mxu0 0.0
    %159 = vmatprep.subr.mxu0 0.0
    %160 = vmatpush1.msra.mxu0 0.0
    %161 = vmatprep.subr.mxu0 0.0
    %162 = vmatpush1.msra.mxu0 0.0
    %163 = vmatprep.subr.mxu0 0.0
    %164 = vmatpush1.msra.mxu0 0.0
    %165 = vmatprep.subr.mxu0 0.0
    %166 = vmatpush1.msra.mxu0 %v128
    %167 = vmatprep.subr.mxu0 0.0
    %168 = vmatpush1.msra.mxu0 %v127
    %169 = vmatprep.subr.mxu0 0.0
    %170 = vmatpush1.msra.mxu0 %v126
    %171 = vmatprep.subr.mxu0 0.0
    %172 = vmatpush1.msra.mxu0 %v125
    %173 = vmatprep.subr.mxu0 0.0
    %174 = vmatpush2.msra.mxu0 0.0
    %175 = vmatprep.subr.mxu0 0.0
    %176 = vmatpush2.msra.mxu0 0.0
    %177 = vmatprep.subr.mxu0 0.0
    %178 = vmatpush2.msra.mxu0 0.0
    %179 = vmatprep.subr.mxu0 0.0
    %180 = vmatpush2.msra.mxu0 0.0
    %181 = vmatprep.subr.mxu0 0.0
    %182 = vmatpush2.msra.mxu0 0.0
    %183 = vmatprep.subr.mxu0 0.0
    %184 = vmatpush2.msra.mxu0 0.0
    %185 = vmatprep.subr.mxu0 0.0
    %186 = vmatpush2.msra.mxu0 0.0
    %187 = vmatprep.subr.mxu0 0.0
    %188 = vmatpush2.msra.mxu0 0.0
    %189 = vmatprep.subr.mxu0 0.0
    %190 = vmatpush2.msra.mxu0 0.0
    %191 = vmatprep.subr.mxu0 0.0
    %192 = vmatpush2.msra.mxu0 0.0
    %193 = vmatprep.subr.mxu0 0.0
    %194 = vmatpush2.msra.mxu0 0.0
    %195 = vmatprep.subr.mxu0 0.0
    %196 = vmatpush2.msra.mxu0 0.0
    %197 = vmatprep.subr.mxu0 0.0
    %198 = vmatpush2.msra.mxu0 0.0
    %199 = vmatprep.subr.mxu0 0.0
    %200 = vmatpush2.msra.mxu0 0.0
    %201 = vmatprep.subr.mxu0 0.0
    %202 = vmatpush2.msra.mxu0 0.0
    %203 = vmatprep.subr.mxu0 0.0
    %204 = vmatpush2.msra.mxu0 0.0
    %205 = vmatprep.mubr.f32.mxu0 0.0
    %206 = vmatmul.mubr.f32.gmra.mxu0 %v139
    %v207 = vpop.f32.mrf.mxu0
    %v208 = vadd.f32 0.0, %v207
    %v209 = vpop.f32.mrf.mxu0
    %210 = vdwg.mxu0
    %v211 = vadd.f32 %v117, %v208
    %v212 = vlaneseq
    %v213 = vand.u32 %v212, 127
    %vm214 = vcmp.ge.s32.totalorder %v213, 64
    %vm215 = vcmp.lt.s32.totalorder %v213, 96
    %vm216 = vmand %vm214, %vm215
    %v217 = vtanh.pop %v211
    %v218 = vxor.u32 %v211, 2147483648
    %v219 = vmul.f32 %v218, 1.442695
    %v220 = vpow.pop %v219
    %v221 = vadd.f32 %v220, 1.0
    %v222 = vrcp.pop %v221
    %v223 = vmul.f32 1.0, %v222
    %v224 = vsel %vm216, %v217, %v223
    %v225 = vmul.f32 %v224, 0.0
    %227 = vrot.lane.b32.xlu0 %v224, 64
    %v228 = vpop.permute.xlu0 %227
    %v230 = vmul.f32 %v224, %v228
    %232 = vrot.lane.b32.xlu0 %v230, 32
    %v233 = vpop.permute.xlu0 %232
    %v235 = vadd.f32 %v225, %v233
    %v236 = vtanh.pop %v235
    %238 = vrot.lane.b32.xlu0 %v236, 64
    %v239 = vpop.permute.xlu0 %238
    %v241 = vmul.f32 %v224, %v239
    %243 = vrot.lane.b32.xlu0 %v241, 32
    %v244 = vpop.permute.xlu0 %243
    %v246 = vsel %vm43, %v244, 0.0
    %v248 = vlaneseq
    %v249 = vshrl.u32 %v248, 7
    %v250 = vsub.s32 0, %v249
    %v251 = vrot.slane %v137, %v250
    %vm253 = vcmask 523264
    %v255 = vsel %vm253, %v246, 0
    %257 = vmatprep.subr.mxu0 0.0
    %258 = vmatpush1.msra.mxu0 0.0
    %259 = vmatprep.subr.mxu0 0.0
    %260 = vmatpush1.msra.mxu0 0.0
    %261 = vmatprep.subr.mxu0 0.0
    %262 = vmatpush1.msra.mxu0 0.0
    %263 = vmatprep.subr.mxu0 0.0
    %264 = vmatpush1.msra.mxu0 0.0
    %265 = vmatprep.subr.mxu0 0.0
    %266 = vmatpush1.msra.mxu0 0.0
    %267 = vmatprep.subr.mxu0 0.0
    %268 = vmatpush1.msra.mxu0 0.0
    %269 = vmatprep.subr.mxu0 0.0
    %270 = vmatpush1.msra.mxu0 0.0
    %271 = vmatprep.subr.mxu0 0.0
    %272 = vmatpush1.msra.mxu0 0.0
    %273 = vmatprep.subr.mxu0 0.0
    %274 = vmatpush1.msra.mxu0 %v136
    %275 = vmatprep.subr.mxu0 0.0
    %276 = vmatpush1.msra.mxu0 %v135
    %277 = vmatprep.subr.mxu0 0.0
    %278 = vmatpush1.msra.mxu0 %v134
    %279 = vmatprep.subr.mxu0 0.0
    %280 = vmatpush1.msra.mxu0 %v133
    %281 = vmatprep.subr.mxu0 0.0
    %282 = vmatpush1.msra.mxu0 %v132
    %283 = vmatprep.subr.mxu0 0.0
    %284 = vmatpush1.msra.mxu0 %v131
    %285 = vmatprep.subr.mxu0 0.0
    %286 = vmatpush1.msra.mxu0 %v130
    %287 = vmatprep.subr.mxu0 0.0
    %288 = vmatpush1.msra.mxu0 %v129
    %289 = vmatprep.subr.mxu0 0.0
    %290 = vmatpush2.msra.mxu0 0.0
    %291 = vmatprep.subr.mxu0 0.0
    %292 = vmatpush2.msra.mxu0 0.0
    %293 = vmatprep.subr.mxu0 0.0
    %294 = vmatpush2.msra.mxu0 0.0
    %295 = vmatprep.subr.mxu0 0.0
    %296 = vmatpush2.msra.mxu0 0.0
    %297 = vmatprep.subr.mxu0 0.0
    %298 = vmatpush2.msra.mxu0 0.0
    %299 = vmatprep.subr.mxu0 0.0
    %300 = vmatpush2.msra.mxu0 0.0
    %301 = vmatprep.subr.mxu0 0.0
    %302 = vmatpush2.msra.mxu0 0.0
    %303 = vmatprep.subr.mxu0 0.0
    %304 = vmatpush2.msra.mxu0 0.0
    %305 = vmatprep.subr.mxu0 0.0
    %306 = vmatpush2.msra.mxu0 0.0
    %307 = vmatprep.subr.mxu0 0.0
    %308 = vmatpush2.msra.mxu0 0.0
    %309 = vmatprep.subr.mxu0 0.0
    %310 = vmatpush2.msra.mxu0 0.0
    %311 = vmatprep.subr.mxu0 0.0
    %312 = vmatpush2.msra.mxu0 0.0
    %313 = vmatprep.subr.mxu0 0.0
    %314 = vmatpush2.msra.mxu0 0.0
    %315 = vmatprep.subr.mxu0 0.0
    %316 = vmatpush2.msra.mxu0 0.0
    %317 = vmatprep.subr.mxu0 0.0
    %318 = vmatpush2.msra.mxu0 0.0
    %319 = vmatprep.subr.mxu0 0.0
    %320 = vmatpush2.msra.mxu0 0.0
    %321 = vmatprep.mubr.f32.mxu0 0.0
    %322 = vmatmul.mubr.f32.gmra.mxu0 %v255
    %v323 = vpop.f32.mrf.mxu0
    %v324 = vadd.f32 %v251, %v323
    %v325 = vpop.f32.mrf.mxu0
    %326 = vdwg.mxu0
    %v327 = vtanh.pop %v324
    %v328 = vxor.u32 %v324, 2147483648
    %v329 = vmul.f32 %v328, 1.442695
    %v330 = vpow.pop %v329
    %v331 = vadd.f32 %v330, 1.0
    %v332 = vrcp.pop %v331
    %v333 = vmul.f32 1.0, %v332
    %v334 = vsel %vm216, %v327, %v333
    %v335 = vmul.f32 %v334, 0.0
    %337 = vrot.lane.b32.xlu0 %v334, 64
    %v338 = vpop.permute.xlu0 %337
    %v340 = vmul.f32 %v334, %v338
    %342 = vrot.lane.b32.xlu0 %v340, 32
    %v343 = vpop.permute.xlu0 %342
    %v345 = vadd.f32 %v335, %v343
    %v346 = vtanh.pop %v345
    %348 = vrot.lane.b32.xlu0 %v346, 64
    %v349 = vpop.permute.xlu0 %348
    %v351 = vmul.f32 %v334, %v349
    %v352 = vsel %vm43, %v244, 0
    %354 = vmatprep.subr.mxu0 0.0
    %355 = vmatpush1.msra.mxu0 0.0
    %356 = vmatprep.subr.mxu0 0.0
    %357 = vmatpush1.msra.mxu0 0.0
    %358 = vmatprep.subr.mxu0 0.0
    %359 = vmatpush1.msra.mxu0 0.0
    %360 = vmatprep.subr.mxu0 0.0
    %361 = vmatpush1.msra.mxu0 0.0
    %362 = vmatprep.subr.mxu0 0.0
    %363 = vmatpush1.msra.mxu0 0.0
    %364 = vmatprep.subr.mxu0 0.0
    %365 = vmatpush1.msra.mxu0 0.0
    %366 = vmatprep.subr.mxu0 0.0
    %367 = vmatpush1.msra.mxu0 0.0
    %368 = vmatprep.subr.mxu0 0.0
    %369 = vmatpush1.msra.mxu0 0.0
    %370 = vmatprep.subr.mxu0 0.0
    %371 = vmatpush1.msra.mxu0 0.0
    %372 = vmatprep.subr.mxu0 0.0
    %373 = vmatpush1.msra.mxu0 0.0
    %374 = vmatprep.subr.mxu0 0.0
    %375 = vmatpush1.msra.mxu0 0.0
    %376 = vmatprep.subr.mxu0 0.0
    %377 = vmatpush1.msra.mxu0 0.0
    %378 = vmatprep.subr.mxu0 0.0
    %379 = vmatpush1.msra.mxu0 %v128
    %380 = vmatprep.subr.mxu0 0.0
    %381 = vmatpush1.msra.mxu0 %v127
    %382 = vmatprep.subr.mxu0 0.0
    %383 = vmatpush1.msra.mxu0 %v126
    %384 = vmatprep.subr.mxu0 0.0
    %385 = vmatpush1.msra.mxu0 %v125
    %386 = vmatprep.subr.mxu0 0.0
    %387 = vmatpush2.msra.mxu0 0.0
    %388 = vmatprep.subr.mxu0 0.0
    %389 = vmatpush2.msra.mxu0 0.0
    %390 = vmatprep.subr.mxu0 0.0
    %391 = vmatpush2.msra.mxu0 0.0
    %392 = vmatprep.subr.mxu0 0.0
    %393 = vmatpush2.msra.mxu0 0.0
    %394 = vmatprep.subr.mxu0 0.0
    %395 = vmatpush2.msra.mxu0 0.0
    %396 = vmatprep.subr.mxu0 0.0
    %397 = vmatpush2.msra.mxu0 0.0
    %398 = vmatprep.subr.mxu0 0.0
    %399 = vmatpush2.msra.mxu0 0.0
    %400 = vmatprep.subr.mxu0 0.0
    %401 = vmatpush2.msra.mxu0 0.0
    %402 = vmatprep.subr.mxu0 0.0
    %403 = vmatpush2.msra.mxu0 0.0
    %404 = vmatprep.subr.mxu0 0.0
    %405 = vmatpush2.msra.mxu0 0.0
    %406 = vmatprep.subr.mxu0 0.0
    %407 = vmatpush2.msra.mxu0 0.0
    %408 = vmatprep.subr.mxu0 0.0
    %409 = vmatpush2.msra.mxu0 0.0
    %410 = vmatprep.subr.mxu0 0.0
    %411 = vmatpush2.msra.mxu0 0.0
    %412 = vmatprep.subr.mxu0 0.0
    %413 = vmatpush2.msra.mxu0 0.0
    %414 = vmatprep.subr.mxu0 0.0
    %415 = vmatpush2.msra.mxu0 0.0
    %416 = vmatprep.subr.mxu0 0.0
    %417 = vmatpush2.msra.mxu0 0.0
    %418 = vmatprep.mubr.f32.mxu0 0.0
    %419 = vmatmul.mubr.f32.gmra.mxu0 %v352
    %v420 = vpop.f32.mrf.mxu0
    %v421 = vadd.f32 0.0, %v420
    %v422 = vpop.f32.mrf.mxu0
    %423 = vdwg.mxu0
    %v425 = vrot.slane %v421, 6
    %v427 = vadd.f32 %v117, %v425
    %v428 = vtanh.pop %v427
    %v429 = vxor.u32 %v427, 2147483648
    %v430 = vmul.f32 %v429, 1.442695
    %v431 = vpow.pop %v430
    %v432 = vadd.f32 %v431, 1.0
    %v433 = vrcp.pop %v432
    %v434 = vmul.f32 1.0, %v433
    %v435 = vsel %vm216, %v428, %v434
    %v437 = vrot.slane %v235, 6
    %v439 = vmul.f32 %v435, %v437
    %441 = vrot.lane.b32.xlu0 %v435, 64
    %v442 = vpop.permute.xlu0 %441
    %v444 = vmul.f32 %v435, %v442
    %446 = vrot.lane.b32.xlu0 %v444, 32
    %v447 = vpop.permute.xlu0 %446
    %v449 = vadd.f32 %v439, %v447
    %v450 = vtanh.pop %v449
    %452 = vrot.lane.b32.xlu0 %v450, 64
    %v453 = vpop.permute.xlu0 %452
    %v455 = vmul.f32 %v435, %v453
    %457 = vrot.lane.b32.xlu0 %v455, 32
    %v458 = vpop.permute.xlu0 %457
    %v461 = vrot.slane %v351, 6
    %462 = vrot.lane.b32.xlu0 %v461, 64
    %v463 = vpop.permute.xlu0 %462
    %v465 = vsel %vm43, %v458, %v463
    %v467 = vrot.slane %v465, 2
    %v468 = vsel %vm253, %v467, 0
    %470 = vmatprep.subr.mxu0 0.0
    %471 = vmatpush1.msra.mxu0 0.0
    %472 = vmatprep.subr.mxu0 0.0
    %473 = vmatpush1.msra.mxu0 0.0
    %474 = vmatprep.subr.mxu0 0.0
    %475 = vmatpush1.msra.mxu0 0.0
    %476 = vmatprep.subr.mxu0 0.0
    %477 = vmatpush1.msra.mxu0 0.0
    %478 = vmatprep.subr.mxu0 0.0
    %479 = vmatpush1.msra.mxu0 0.0
    %480 = vmatprep.subr.mxu0 0.0
    %481 = vmatpush1.msra.mxu0 0.0
    %482 = vmatprep.subr.mxu0 0.0
    %483 = vmatpush1.msra.mxu0 0.0
    %484 = vmatprep.subr.mxu0 0.0
    %485 = vmatpush1.msra.mxu0 0.0
    %486 = vmatprep.subr.mxu0 0.0
    %487 = vmatpush1.msra.mxu0 %v136
    %488 = vmatprep.subr.mxu0 0.0
    %489 = vmatpush1.msra.mxu0 %v135
    %490 = vmatprep.subr.mxu0 0.0
    %491 = vmatpush1.msra.mxu0 %v134
    %492 = vmatprep.subr.mxu0 0.0
    %493 = vmatpush1.msra.mxu0 %v133
    %494 = vmatprep.subr.mxu0 0.0
    %495 = vmatpush1.msra.mxu0 %v132
    %496 = vmatprep.subr.mxu0 0.0
    %497 = vmatpush1.msra.mxu0 %v131
    %498 = vmatprep.subr.mxu0 0.0
    %499 = vmatpush1.msra.mxu0 %v130
    %500 = vmatprep.subr.mxu0 0.0
    %501 = vmatpush1.msra.mxu0 %v129
    %502 = vmatprep.subr.mxu0 0.0
    %503 = vmatpush2.msra.mxu0 0.0
    %504 = vmatprep.subr.mxu0 0.0
    %505 = vmatpush2.msra.mxu0 0.0
    %506 = vmatprep.subr.mxu0 0.0
    %507 = vmatpush2.msra.mxu0 0.0
    %508 = vmatprep.subr.mxu0 0.0
    %509 = vmatpush2.msra.mxu0 0.0
    %510 = vmatprep.subr.mxu0 0.0
    %511 = vmatpush2.msra.mxu0 0.0
    %512 = vmatprep.subr.mxu0 0.0
    %513 = vmatpush2.msra.mxu0 0.0
    %514 = vmatprep.subr.mxu0 0.0
    %515 = vmatpush2.msra.mxu0 0.0
    %516 = vmatprep.subr.mxu0 0.0
    %517 = vmatpush2.msra.mxu0 0.0
    %518 = vmatprep.subr.mxu0 0.0
    %519 = vmatpush2.msra.mxu0 0.0
    %520 = vmatprep.subr.mxu0 0.0
    %521 = vmatpush2.msra.mxu0 0.0
    %522 = vmatprep.subr.mxu0 0.0
    %523 = vmatpush2.msra.mxu0 0.0
    %524 = vmatprep.subr.mxu0 0.0
    %525 = vmatpush2.msra.mxu0 0.0
    %526 = vmatprep.subr.mxu0 0.0
    %527 = vmatpush2.msra.mxu0 0.0
    %528 = vmatprep.subr.mxu0 0.0
    %529 = vmatpush2.msra.mxu0 0.0
    %530 = vmatprep.subr.mxu0 0.0
    %531 = vmatpush2.msra.mxu0 0.0
    %532 = vmatprep.subr.mxu0 0.0
    %533 = vmatpush2.msra.mxu0 0.0
    %534 = vmatprep.mubr.f32.mxu0 0.0
    %535 = vmatmul.mubr.f32.gmra.mxu0 %v468
    %v536 = vpop.f32.mrf.mxu0
    %v537 = vadd.f32 %v251, %v536
    %v538 = vpop.f32.mrf.mxu0
    %539 = vdwg.mxu0
    %v540 = vtanh.pop %v537
    %v541 = vxor.u32 %v537, 2147483648
    %v542 = vmul.f32 %v541, 1.442695
    %v543 = vpow.pop %v542
    %v544 = vadd.f32 %v543, 1.0
    %v545 = vrcp.pop %v544
    %v546 = vmul.f32 1.0, %v545
    %v547 = vsel %vm216, %v540, %v546
    %v548 = vmul.f32 %v547, %v345
    %550 = vrot.lane.b32.xlu0 %v547, 64
    %v551 = vpop.permute.xlu0 %550
    %v553 = vmul.f32 %v547, %v551
    %555 = vrot.lane.b32.xlu0 %v553, 32
    %v556 = vpop.permute.xlu0 %555
    %v558 = vadd.f32 %v548, %v556
    %v559 = vtanh.pop %v558
    %561 = vrot.lane.b32.xlu0 %v559, 64
    %v562 = vpop.permute.xlu0 %561
    %v564 = vmul.f32 %v547, %v562
    %v565 = vrot.slane %v455, 2
    %566 = vrot.lane.b32.xlu0 %v565, 32
    %v567 = vpop.permute.xlu0 %566
    %v568 = vsel %vm43, %v567, 0
    %570 = vmatprep.subr.mxu0 0.0
    %571 = vmatpush1.msra.mxu0 0.0
    %572 = vmatprep.subr.mxu0 0.0
    %573 = vmatpush1.msra.mxu0 0.0
    %574 = vmatprep.subr.mxu0 0.0
    %575 = vmatpush1.msra.mxu0 0.0
    %576 = vmatprep.subr.mxu0 0.0
    %577 = vmatpush1.msra.mxu0 0.0
    %578 = vmatprep.subr.mxu0 0.0
    %579 = vmatpush1.msra.mxu0 0.0
    %580 = vmatprep.subr.mxu0 0.0
    %581 = vmatpush1.msra.mxu0 0.0
    %582 = vmatprep.subr.mxu0 0.0
    %583 = vmatpush1.msra.mxu0 0.0
    %584 = vmatprep.subr.mxu0 0.0
    %585 = vmatpush1.msra.mxu0 0.0
    %586 = vmatprep.subr.mxu0 0.0
    %587 = vmatpush1.msra.mxu0 0.0
    %588 = vmatprep.subr.mxu0 0.0
    %589 = vmatpush1.msra.mxu0 0.0
    %590 = vmatprep.subr.mxu0 0.0
    %591 = vmatpush1.msra.mxu0 0.0
    %592 = vmatprep.subr.mxu0 0.0
    %593 = vmatpush1.msra.mxu0 0.0
    %594 = vmatprep.subr.mxu0 0.0
    %595 = vmatpush1.msra.mxu0 %v128
    %596 = vmatprep.subr.mxu0 0.0
    %597 = vmatpush1.msra.mxu0 %v127
    %598 = vmatprep.subr.mxu0 0.0
    %599 = vmatpush1.msra.mxu0 %v126
    %600 = vmatprep.subr.mxu0 0.0
    %601 = vmatpush1.msra.mxu0 %v125
    %602 = vmatprep.subr.mxu0 0.0
    %603 = vmatpush2.msra.mxu0 0.0
    %604 = vmatprep.subr.mxu0 0.0
    %605 = vmatpush2.msra.mxu0 0.0
    %606 = vmatprep.subr.mxu0 0.0
    %607 = vmatpush2.msra.mxu0 0.0
    %608 = vmatprep.subr.mxu0 0.0
    %609 = vmatpush2.msra.mxu0 0.0
    %610 = vmatprep.subr.mxu0 0.0
    %611 = vmatpush2.msra.mxu0 0.0
    %612 = vmatprep.subr.mxu0 0.0
    %613 = vmatpush2.msra.mxu0 0.0
    %614 = vmatprep.subr.mxu0 0.0
    %615 = vmatpush2.msra.mxu0 0.0
    %616 = vmatprep.subr.mxu0 0.0
    %617 = vmatpush2.msra.mxu0 0.0
    %618 = vmatprep.subr.mxu0 0.0
    %619 = vmatpush2.msra.mxu0 0.0
    %620 = vmatprep.subr.mxu0 0.0
    %621 = vmatpush2.msra.mxu0 0.0
    %622 = vmatprep.subr.mxu0 0.0
    %623 = vmatpush2.msra.mxu0 0.0
    %624 = vmatprep.subr.mxu0 0.0
    %625 = vmatpush2.msra.mxu0 0.0
    %626 = vmatprep.subr.mxu0 0.0
    %627 = vmatpush2.msra.mxu0 0.0
    %628 = vmatprep.subr.mxu0 0.0
    %629 = vmatpush2.msra.mxu0 0.0
    %630 = vmatprep.subr.mxu0 0.0
    %631 = vmatpush2.msra.mxu0 0.0
    %632 = vmatprep.subr.mxu0 0.0
    %633 = vmatpush2.msra.mxu0 0.0
    %634 = vmatprep.mubr.f32.mxu0 0.0
    %635 = vmatmul.mubr.f32.gmra.mxu0 %v568
    %v636 = vpop.f32.mrf.mxu0
    %v637 = vadd.f32 0.0, %v636
    %v638 = vpop.f32.mrf.mxu0
    %639 = vdwg.mxu0
    %v641 = vrot.slane %v637, 4
    %v643 = vadd.f32 %v117, %v641
    %v644 = vtanh.pop %v643
    %v645 = vxor.u32 %v643, 2147483648
    %v646 = vmul.f32 %v645, 1.442695
    %v647 = vpow.pop %v646
    %v648 = vadd.f32 %v647, 1.0
    %v649 = vrcp.pop %v648
    %v650 = vmul.f32 1.0, %v649
    %v651 = vsel %vm216, %v644, %v650
    %v653 = vrot.slane %v449, 6
    %v655 = vmul.f32 %v651, %v653
    %657 = vrot.lane.b32.xlu0 %v651, 64
    %v658 = vpop.permute.xlu0 %657
    %v660 = vmul.f32 %v651, %v658
    %662 = vrot.lane.b32.xlu0 %v660, 32
    %v663 = vpop.permute.xlu0 %662
    %v665 = vadd.f32 %v655, %v663
    %v666 = vtanh.pop %v665
    %668 = vrot.lane.b32.xlu0 %v666, 64
    %v669 = vpop.permute.xlu0 %668
    %v671 = vmul.f32 %v651, %v669
    %673 = vrot.lane.b32.xlu0 %v671, 32
    %v674 = vpop.permute.xlu0 %673
    %v677 = vrot.slane %v564, 4
    %678 = vrot.lane.b32.xlu0 %v677, 64
    %v679 = vpop.permute.xlu0 %678
    %v681 = vsel %vm43, %v674, %v679
    %v683 = vrot.slane %v681, 4
    %v684 = vsel %vm253, %v683, 0
    %686 = vmatprep.subr.mxu0 0.0
    %687 = vmatpush1.msra.mxu0 0.0
    %688 = vmatprep.subr.mxu0 0.0
    %689 = vmatpush1.msra.mxu0 0.0
    %690 = vmatprep.subr.mxu0 0.0
    %691 = vmatpush1.msra.mxu0 0.0
    %692 = vmatprep.subr.mxu0 0.0
    %693 = vmatpush1.msra.mxu0 0.0
    %694 = vmatprep.subr.mxu0 0.0
    %695 = vmatpush1.msra.mxu0 0.0
    %696 = vmatprep.subr.mxu0 0.0
    %697 = vmatpush1.msra.mxu0 0.0
    %698 = vmatprep.subr.mxu0 0.0
    %699 = vmatpush1.msra.mxu0 0.0
    %700 = vmatprep.subr.mxu0 0.0
    %701 = vmatpush1.msra.mxu0 0.0
    %702 = vmatprep.subr.mxu0 0.0
    %703 = vmatpush1.msra.mxu0 %v136
    %704 = vmatprep.subr.mxu0 0.0
    %705 = vmatpush1.msra.mxu0 %v135
    %706 = vmatprep.subr.mxu0 0.0
    %707 = vmatpush1.msra.mxu0 %v134
    %708 = vmatprep.subr.mxu0 0.0
    %709 = vmatpush1.msra.mxu0 %v133
    %710 = vmatprep.subr.mxu0 0.0
    %711 = vmatpush1.msra.mxu0 %v132
    %712 = vmatprep.subr.mxu0 0.0
    %713 = vmatpush1.msra.mxu0 %v131
    %714 = vmatprep.subr.mxu0 0.0
    %715 = vmatpush1.msra.mxu0 %v130
    %716 = vmatprep.subr.mxu0 0.0
    %717 = vmatpush1.msra.mxu0 %v129
    %718 = vmatprep.subr.mxu0 0.0
    %719 = vmatpush2.msra.mxu0 0.0
    %720 = vmatprep.subr.mxu0 0.0
    %721 = vmatpush2.msra.mxu0 0.0
    %722 = vmatprep.subr.mxu0 0.0
    %723 = vmatpush2.msra.mxu0 0.0
    %724 = vmatprep.subr.mxu0 0.0
    %725 = vmatpush2.msra.mxu0 0.0
    %726 = vmatprep.subr.mxu0 0.0
    %727 = vmatpush2.msra.mxu0 0.0
    %728 = vmatprep.subr.mxu0 0.0
    %729 = vmatpush2.msra.mxu0 0.0
    %730 = vmatprep.subr.mxu0 0.0
    %731 = vmatpush2.msra.mxu0 0.0
    %732 = vmatprep.subr.mxu0 0.0
    %733 = vmatpush2.msra.mxu0 0.0
    %734 = vmatprep.subr.mxu0 0.0
    %735 = vmatpush2.msra.mxu0 0.0
    %736 = vmatprep.subr.mxu0 0.0
    %737 = vmatpush2.msra.mxu0 0.0
    %738 = vmatprep.subr.mxu0 0.0
    %739 = vmatpush2.msra.mxu0 0.0
    %740 = vmatprep.subr.mxu0 0.0
    %741 = vmatpush2.msra.mxu0 0.0
    %742 = vmatprep.subr.mxu0 0.0
    %743 = vmatpush2.msra.mxu0 0.0
    %744 = vmatprep.subr.mxu0 0.0
    %745 = vmatpush2.msra.mxu0 0.0
    %746 = vmatprep.subr.mxu0 0.0
    %747 = vmatpush2.msra.mxu0 0.0
    %748 = vmatprep.subr.mxu0 0.0
    %749 = vmatpush2.msra.mxu0 0.0
    %750 = vmatprep.mubr.f32.mxu0 0.0
    %751 = vmatmul.mubr.f32.gmra.mxu0 %v684
    %v752 = vpop.f32.mrf.mxu0
    %v753 = vadd.f32 %v251, %v752
    %v754 = vpop.f32.mrf.mxu0
    %755 = vdwg.mxu0
    %v756 = vtanh.pop %v753
    %v757 = vxor.u32 %v753, 2147483648
    %v758 = vmul.f32 %v757, 1.442695
    %v759 = vpow.pop %v758
    %v760 = vadd.f32 %v759, 1.0
    %v761 = vrcp.pop %v760
    %v762 = vmul.f32 1.0, %v761
    %v763 = vsel %vm216, %v756, %v762
    %v764 = vmul.f32 %v763, %v558
    %766 = vrot.lane.b32.xlu0 %v763, 64
    %v767 = vpop.permute.xlu0 %766
    %v769 = vmul.f32 %v763, %v767
    %771 = vrot.lane.b32.xlu0 %v769, 32
    %v772 = vpop.permute.xlu0 %771
    %v774 = vadd.f32 %v764, %v772
    %v775 = vtanh.pop %v774
    %777 = vrot.lane.b32.xlu0 %v775, 64
    %v778 = vpop.permute.xlu0 %777
    %v780 = vmul.f32 %v763, %v778
    %v781 = vrot.slane %v671, 4
    %782 = vrot.lane.b32.xlu0 %v781, 32
    %v783 = vpop.permute.xlu0 %782
    %v784 = vsel %vm43, %v783, 0
    %786 = vmatprep.subr.mxu0 0.0
    %787 = vmatpush1.msra.mxu0 0.0
    %788 = vmatprep.subr.mxu0 0.0
    %789 = vmatpush1.msra.mxu0 0.0
    %790 = vmatprep.subr.mxu0 0.0
    %791 = vmatpush1.msra.mxu0 0.0
    %792 = vmatprep.subr.mxu0 0.0
    %793 = vmatpush1.msra.mxu0 0.0
    %794 = vmatprep.subr.mxu0 0.0
    %795 = vmatpush1.msra.mxu0 0.0
    %796 = vmatprep.subr.mxu0 0.0
    %797 = vmatpush1.msra.mxu0 0.0
    %798 = vmatprep.subr.mxu0 0.0
    %799 = vmatpush1.msra.mxu0 0.0
    %800 = vmatprep.subr.mxu0 0.0
    %801 = vmatpush1.msra.mxu0 0.0
    %802 = vmatprep.subr.mxu0 0.0
    %803 = vmatpush1.msra.mxu0 0.0
    %804 = vmatprep.subr.mxu0 0.0
    %805 = vmatpush1.msra.mxu0 0.0
    %806 = vmatprep.subr.mxu0 0.0
    %807 = vmatpush1.msra.mxu0 0.0
    %808 = vmatprep.subr.mxu0 0.0
    %809 = vmatpush1.msra.mxu0 0.0
    %810 = vmatprep.subr.mxu0 0.0
    %811 = vmatpush1.msra.mxu0 %v128
    %812 = vmatprep.subr.mxu0 0.0
    %813 = vmatpush1.msra.mxu0 %v127
    %814 = vmatprep.subr.mxu0 0.0
    %815 = vmatpush1.msra.mxu0 %v126
    %816 = vmatprep.subr.mxu0 0.0
    %817 = vmatpush1.msra.mxu0 %v125
    %818 = vmatprep.subr.mxu0 0.0
    %819 = vmatpush2.msra.mxu0 0.0
    %820 = vmatprep.subr.mxu0 0.0
    %821 = vmatpush2.msra.mxu0 0.0
    %822 = vmatprep.subr.mxu0 0.0
    %823 = vmatpush2.msra.mxu0 0.0
    %824 = vmatprep.subr.mxu0 0.0
    %825 = vmatpush2.msra.mxu0 0.0
    %826 = vmatprep.subr.mxu0 0.0
    %827 = vmatpush2.msra.mxu0 0.0
    %828 = vmatprep.subr.mxu0 0.0
    %829 = vmatpush2.msra.mxu0 0.0
    %830 = vmatprep.subr.mxu0 0.0
    %831 = vmatpush2.msra.mxu0 0.0
    %832 = vmatprep.subr.mxu0 0.0
    %833 = vmatpush2.msra.mxu0 0.0
    %834 = vmatprep.subr.mxu0 0.0
    %835 = vmatpush2.msra.mxu0 0.0
    %836 = vmatprep.subr.mxu0 0.0
    %837 = vmatpush2.msra.mxu0 0.0
    %838 = vmatprep.subr.mxu0 0.0
    %839 = vmatpush2.msra.mxu0 0.0
    %840 = vmatprep.subr.mxu0 0.0
    %841 = vmatpush2.msra.mxu0 0.0
    %842 = vmatprep.subr.mxu0 0.0
    %843 = vmatpush2.msra.mxu0 0.0
    %844 = vmatprep.subr.mxu0 0.0
    %845 = vmatpush2.msra.mxu0 0.0
    %846 = vmatprep.subr.mxu0 0.0
    %847 = vmatpush2.msra.mxu0 0.0
    %848 = vmatprep.subr.mxu0 0.0
    %849 = vmatpush2.msra.mxu0 0.0
    %850 = vmatprep.mubr.f32.mxu0 0.0
    %851 = vmatmul.mubr.f32.gmra.mxu0 %v784
    %v852 = vpop.f32.mrf.mxu0
    %v853 = vadd.f32 0.0, %v852
    %v854 = vpop.f32.mrf.mxu0
    %855 = vdwg.mxu0
    %v857 = vrot.slane %v853, 2
    %v859 = vadd.f32 %v117, %v857
    %v860 = vtanh.pop %v859
    %v861 = vxor.u32 %v859, 2147483648
    %v862 = vmul.f32 %v861, 1.442695
    %v863 = vpow.pop %v862
    %v864 = vadd.f32 %v863, 1.0
    %v865 = vrcp.pop %v864
    %v866 = vmul.f32 1.0, %v865
    %v867 = vsel %vm216, %v860, %v866
    %v869 = vrot.slane %v665, 6
    %v871 = vmul.f32 %v867, %v869
    %873 = vrot.lane.b32.xlu0 %v867, 64
    %v874 = vpop.permute.xlu0 %873
    %v876 = vmul.f32 %v867, %v874
    %878 = vrot.lane.b32.xlu0 %v876, 32
    %v879 = vpop.permute.xlu0 %878
    %v881 = vadd.f32 %v871, %v879
    %v882 = vtanh.pop %v881
    %884 = vrot.lane.b32.xlu0 %v882, 64
    %v885 = vpop.permute.xlu0 %884
    %v887 = vmul.f32 %v867, %v885
    %889 = vrot.lane.b32.xlu0 %v887, 32
    %v890 = vpop.permute.xlu0 %889
    %v893 = vrot.slane %v780, 2
    %894 = vrot.lane.b32.xlu0 %v893, 64
    %v895 = vpop.permute.xlu0 %894
    %v897 = vsel %vm43, %v890, %v895
    %v899 = vrot.slane %v897, 6
    %v900 = vsel %vm253, %v899, 0
    %902 = vmatprep.subr.mxu0 0.0
    %903 = vmatpush1.msra.mxu0 0.0
    %904 = vmatprep.subr.mxu0 0.0
    %905 = vmatpush1.msra.mxu0 0.0
    %906 = vmatprep.subr.mxu0 0.0
    %907 = vmatpush1.msra.mxu0 0.0
    %908 = vmatprep.subr.mxu0 0.0
    %909 = vmatpush1.msra.mxu0 0.0
    %910 = vmatprep.subr.mxu0 0.0
    %911 = vmatpush1.msra.mxu0 0.0
    %912 = vmatprep.subr.mxu0 0.0
    %913 = vmatpush1.msra.mxu0 0.0
    %914 = vmatprep.subr.mxu0 0.0
    %915 = vmatpush1.msra.mxu0 0.0
    %916 = vmatprep.subr.mxu0 0.0
    %917 = vmatpush1.msra.mxu0 0.0
    %918 = vmatprep.subr.mxu0 0.0
    %919 = vmatpush1.msra.mxu0 %v136
    %920 = vmatprep.subr.mxu0 0.0
    %921 = vmatpush1.msra.mxu0 %v135
    %922 = vmatprep.subr.mxu0 0.0
    %923 = vmatpush1.msra.mxu0 %v134
    %924 = vmatprep.subr.mxu0 0.0
    %925 = vmatpush1.msra.mxu0 %v133
    %926 = vmatprep.subr.mxu0 0.0
    %927 = vmatpush1.msra.mxu0 %v132
    %928 = vmatprep.subr.mxu0 0.0
    %929 = vmatpush1.msra.mxu0 %v131
    %930 = vmatprep.subr.mxu0 0.0
    %931 = vmatpush1.msra.mxu0 %v130
    %932 = vmatprep.subr.mxu0 0.0
    %933 = vmatpush1.msra.mxu0 %v129
    %934 = vmatprep.subr.mxu0 0.0
    %935 = vmatpush2.msra.mxu0 0.0
    %936 = vmatprep.subr.mxu0 0.0
    %937 = vmatpush2.msra.mxu0 0.0
    %938 = vmatprep.subr.mxu0 0.0
    %939 = vmatpush2.msra.mxu0 0.0
    %940 = vmatprep.subr.mxu0 0.0
    %941 = vmatpush2.msra.mxu0 0.0
    %942 = vmatprep.subr.mxu0 0.0
    %943 = vmatpush2.msra.mxu0 0.0
    %944 = vmatprep.subr.mxu0 0.0
    %945 = vmatpush2.msra.mxu0 0.0
    %946 = vmatprep.subr.mxu0 0.0
    %947 = vmatpush2.msra.mxu0 0.0
    %948 = vmatprep.subr.mxu0 0.0
    %949 = vmatpush2.msra.mxu0 0.0
    %950 = vmatprep.subr.mxu0 0.0
    %951 = vmatpush2.msra.mxu0 0.0
    %952 = vmatprep.subr.mxu0 0.0
    %953 = vmatpush2.msra.mxu0 0.0
    %954 = vmatprep.subr.mxu0 0.0
    %955 = vmatpush2.msra.mxu0 0.0
    %956 = vmatprep.subr.mxu0 0.0
    %957 = vmatpush2.msra.mxu0 0.0
    %958 = vmatprep.subr.mxu0 0.0
    %959 = vmatpush2.msra.mxu0 0.0
    %960 = vmatprep.subr.mxu0 0.0
    %961 = vmatpush2.msra.mxu0 0.0
    %962 = vmatprep.subr.mxu0 0.0
    %963 = vmatpush2.msra.mxu0 0.0
    %964 = vmatprep.subr.mxu0 0.0
    %965 = vmatpush2.msra.mxu0 0.0
    %966 = vmatprep.mubr.f32.mxu0 0.0
    %967 = vmatmul.mubr.f32.gmra.mxu0 %v900
    %v968 = vpop.f32.mrf.mxu0
    %v969 = vadd.f32 %v251, %v968
    %v970 = vpop.f32.mrf.mxu0
    %971 = vdwg.mxu0
    %v972 = vtanh.pop %v969
    %v973 = vxor.u32 %v969, 2147483648
    %v974 = vmul.f32 %v973, 1.442695
    %v975 = vpow.pop %v974
    %v976 = vadd.f32 %v975, 1.0
    %v977 = vrcp.pop %v976
    %v978 = vmul.f32 1.0, %v977
    %v979 = vsel %vm216, %v972, %v978
    %v980 = vmul.f32 %v979, %v774
    %982 = vrot.lane.b32.xlu0 %v979, 64
    %v983 = vpop.permute.xlu0 %982
    %v985 = vmul.f32 %v979, %v983
    %987 = vrot.lane.b32.xlu0 %v985, 32
    %v988 = vpop.permute.xlu0 %987
    %v990 = vadd.f32 %v980, %v988
    %v991 = vtanh.pop %v990
    %993 = vrot.lane.b32.xlu0 %v991, 64
    %v994 = vpop.permute.xlu0 %993
    %v996 = vmul.f32 %v979, %v994
    %v997 = vrot.slane %v887, 6
    %998 = vrot.lane.b32.xlu0 %v997, 32
    %v999 = vpop.permute.xlu0 %998
    %v1000 = vsel %vm43, %v999, 0
    %1002 = vmatprep.subr.mxu0 0.0
    %1003 = vmatpush1.msra.mxu0 0.0
    %1004 = vmatprep.subr.mxu0 0.0
    %1005 = vmatpush1.msra.mxu0 0.0
    %1006 = vmatprep.subr.mxu0 0.0
    %1007 = vmatpush1.msra.mxu0 0.0
    %1008 = vmatprep.subr.mxu0 0.0
    %1009 = vmatpush1.msra.mxu0 0.0
    %1010 = vmatprep.subr.mxu0 0.0
    %1011 = vmatpush1.msra.mxu0 0.0
    %1012 = vmatprep.subr.mxu0 0.0
    %1013 = vmatpush1.msra.mxu0 0.0
    %1014 = vmatprep.subr.mxu0 0.0
    %1015 = vmatpush1.msra.mxu0 0.0
    %1016 = vmatprep.subr.mxu0 0.0
    %1017 = vmatpush1.msra.mxu0 0.0
    %1018 = vmatprep.subr.mxu0 0.0
    %1019 = vmatpush1.msra.mxu0 0.0
    %1020 = vmatprep.subr.mxu0 0.0
    %1021 = vmatpush1.msra.mxu0 0.0
    %1022 = vmatprep.subr.mxu0 0.0
    %1023 = vmatpush1.msra.mxu0 0.0
    %1024 = vmatprep.subr.mxu0 0.0
    %1025 = vmatpush1.msra.mxu0 0.0
    %1026 = vmatprep.subr.mxu0 0.0
    %1027 = vmatpush1.msra.mxu0 %v128
    %1028 = vmatprep.subr.mxu0 0.0
    %1029 = vmatpush1.msra.mxu0 %v127
    %1030 = vmatprep.subr.mxu0 0.0
    %1031 = vmatpush1.msra.mxu0 %v126
    %1032 = vmatprep.subr.mxu0 0.0
    %1033 = vmatpush1.msra.mxu0 %v125
    %1034 = vmatprep.subr.mxu0 0.0
    %1035 = vmatpush2.msra.mxu0 0.0
    %1036 = vmatprep.subr.mxu0 0.0
    %1037 = vmatpush2.msra.mxu0 0.0
    %1038 = vmatprep.subr.mxu0 0.0
    %1039 = vmatpush2.msra.mxu0 0.0
    %1040 = vmatprep.subr.mxu0 0.0
    %1041 = vmatpush2.msra.mxu0 0.0
    %1042 = vmatprep.subr.mxu0 0.0
    %1043 = vmatpush2.msra.mxu0 0.0
    %1044 = vmatprep.subr.mxu0 0.0
    %1045 = vmatpush2.msra.mxu0 0.0
    %1046 = vmatprep.subr.mxu0 0.0
    %1047 = vmatpush2.msra.mxu0 0.0
    %1048 = vmatprep.subr.mxu0 0.0
    %1049 = vmatpush2.msra.mxu0 0.0
    %1050 = vmatprep.subr.mxu0 0.0
    %1051 = vmatpush2.msra.mxu0 0.0
    %1052 = vmatprep.subr.mxu0 0.0
    %1053 = vmatpush2.msra.mxu0 0.0
    %1054 = vmatprep.subr.mxu0 0.0
    %1055 = vmatpush2.msra.mxu0 0.0
    %1056 = vmatprep.subr.mxu0 0.0
    %1057 = vmatpush2.msra.mxu0 0.0
    %1058 = vmatprep.subr.mxu0 0.0
    %1059 = vmatpush2.msra.mxu0 0.0
    %1060 = vmatprep.subr.mxu0 0.0
    %1061 = vmatpush2.msra.mxu0 0.0
    %1062 = vmatprep.subr.mxu0 0.0
    %1063 = vmatpush2.msra.mxu0 0.0
    %1064 = vmatprep.subr.mxu0 0.0
    %1065 = vmatpush2.msra.mxu0 0.0
    %1066 = vmatprep.mubr.f32.mxu0 0.0
    %1067 = vmatmul.mubr.f32.gmra.mxu0 %v1000
    %v1068 = vpop.f32.mrf.mxu0
    %v1069 = vadd.f32 0.0, %v1068
    %v1070 = vpop.f32.mrf.mxu0
    %1071 = vdwg.mxu0
    %v1072 = vadd.f32 %v122, %v1069
    %v1073 = vtanh.pop %v1072
    %v1074 = vxor.u32 %v1072, 2147483648
    %v1075 = vmul.f32 %v1074, 1.442695
    %v1076 = vpow.pop %v1075
    %v1077 = vadd.f32 %v1076, 1.0
    %v1078 = vrcp.pop %v1077
    %v1079 = vmul.f32 1.0, %v1078
    %v1080 = vsel %vm216, %v1073, %v1079
    %v1082 = vrot.slane %v881, 6
    %v1084 = vmul.f32 %v1080, %v1082
    %1086 = vrot.lane.b32.xlu0 %v1080, 64
    %v1087 = vpop.permute.xlu0 %1086
    %v1089 = vmul.f32 %v1080, %v1087
    %1091 = vrot.lane.b32.xlu0 %v1089, 32
    %v1092 = vpop.permute.xlu0 %1091
    %v1094 = vadd.f32 %v1084, %v1092
    %v1095 = vtanh.pop %v1094
    %1097 = vrot.lane.b32.xlu0 %v1095, 64
    %v1098 = vpop.permute.xlu0 %1097
    %v1100 = vmul.f32 %v1080, %v1098
    %1102 = vrot.lane.b32.xlu0 %v1100, 32
    %v1103 = vpop.permute.xlu0 %1102
    %1106 = vrot.lane.b32.xlu0 %v996, 64
    %v1107 = vpop.permute.xlu0 %1106
    %v1109 = vsel %vm43, %v1103, %v1107
    %v1111 = vsel %vm253, %v1109, 0
    %1113 = vmatprep.subr.mxu0 0.0
    %1114 = vmatpush1.msra.mxu0 0.0
    %1115 = vmatprep.subr.mxu0 0.0
    %1116 = vmatpush1.msra.mxu0 0.0
    %1117 = vmatprep.subr.mxu0 0.0
    %1118 = vmatpush1.msra.mxu0 0.0
    %1119 = vmatprep.subr.mxu0 0.0
    %1120 = vmatpush1.msra.mxu0 0.0
    %1121 = vmatprep.subr.mxu0 0.0
    %1122 = vmatpush1.msra.mxu0 0.0
    %1123 = vmatprep.subr.mxu0 0.0
    %1124 = vmatpush1.msra.mxu0 0.0
    %1125 = vmatprep.subr.mxu0 0.0
    %1126 = vmatpush1.msra.mxu0 0.0
    %1127 = vmatprep.subr.mxu0 0.0
    %1128 = vmatpush1.msra.mxu0 0.0
    %1129 = vmatprep.subr.mxu0 0.0
    %1130 = vmatpush1.msra.mxu0 %v136
    %1131 = vmatprep.subr.mxu0 0.0
    %1132 = vmatpush1.msra.mxu0 %v135
    %1133 = vmatprep.subr.mxu0 0.0
    %1134 = vmatpush1.msra.mxu0 %v134
    %1135 = vmatprep.subr.mxu0 0.0
    %1136 = vmatpush1.msra.mxu0 %v133
    %1137 = vmatprep.subr.mxu0 0.0
    %1138 = vmatpush1.msra.mxu0 %v132
    %1139 = vmatprep.subr.mxu0 0.0
    %1140 = vmatpush1.msra.mxu0 %v131
    %1141 = vmatprep.subr.mxu0 0.0
    %1142 = vmatpush1.msra.mxu0 %v130
    %1143 = vmatprep.subr.mxu0 0.0
    %1144 = vmatpush1.msra.mxu0 %v129
    %1145 = vmatprep.subr.mxu0 0.0
    %1146 = vmatpush2.msra.mxu0 0.0
    %1147 = vmatprep.subr.mxu0 0.0
    %1148 = vmatpush2.msra.mxu0 0.0
    %1149 = vmatprep.subr.mxu0 0.0
    %1150 = vmatpush2.msra.mxu0 0.0
    %1151 = vmatprep.subr.mxu0 0.0
    %1152 = vmatpush2.msra.mxu0 0.0
    %1153 = vmatprep.subr.mxu0 0.0
    %1154 = vmatpush2.msra.mxu0 0.0
    %1155 = vmatprep.subr.mxu0 0.0
    %1156 = vmatpush2.msra.mxu0 0.0
    %1157 = vmatprep.subr.mxu0 0.0
    %1158 = vmatpush2.msra.mxu0 0.0
    %1159 = vmatprep.subr.mxu0 0.0
    %1160 = vmatpush2.msra.mxu0 0.0
    %1161 = vmatprep.subr.mxu0 0.0
    %1162 = vmatpush2.msra.mxu0 0.0
    %1163 = vmatprep.subr.mxu0 0.0
    %1164 = vmatpush2.msra.mxu0 0.0
    %1165 = vmatprep.subr.mxu0 0.0
    %1166 = vmatpush2.msra.mxu0 0.0
    %1167 = vmatprep.subr.mxu0 0.0
    %1168 = vmatpush2.msra.mxu0 0.0
    %1169 = vmatprep.subr.mxu0 0.0
    %1170 = vmatpush2.msra.mxu0 0.0
    %1171 = vmatprep.subr.mxu0 0.0
    %1172 = vmatpush2.msra.mxu0 0.0
    %1173 = vmatprep.subr.mxu0 0.0
    %1174 = vmatpush2.msra.mxu0 0.0
    %1175 = vmatprep.subr.mxu0 0.0
    %1176 = vmatpush2.msra.mxu0 0.0
    %1177 = vmatprep.mubr.f32.mxu0 0.0
    %1178 = vmatmul.mubr.f32.gmra.mxu0 %v1111
    %v1179 = vpop.f32.mrf.mxu0
    %v1180 = vadd.f32 %v251, %v1179
    %v1181 = vpop.f32.mrf.mxu0
    %1182 = vdwg.mxu0
    %v1183 = vtanh.pop %v1180
    %v1184 = vxor.u32 %v1180, 2147483648
    %v1185 = vmul.f32 %v1184, 1.442695
    %v1186 = vpow.pop %v1185
    %v1187 = vadd.f32 %v1186, 1.0
    %v1188 = vrcp.pop %v1187
    %v1189 = vmul.f32 1.0, %v1188
    %v1190 = vsel %vm216, %v1183, %v1189
    %v1191 = vmul.f32 %v1190, %v990
    %1193 = vrot.lane.b32.xlu0 %v1190, 64
    %v1194 = vpop.permute.xlu0 %1193
    %v1196 = vmul.f32 %v1190, %v1194
    %1198 = vrot.lane.b32.xlu0 %v1196, 32
    %v1199 = vpop.permute.xlu0 %1198
    %v1201 = vadd.f32 %v1191, %v1199
    %v1202 = vtanh.pop %v1201
    %1204 = vrot.lane.b32.xlu0 %v1202, 64
    %v1205 = vpop.permute.xlu0 %1204
    %v1207 = vmul.f32 %v1190, %v1205
    %v1208 = vsel %vm43, %v1103, 0
    %1210 = vmatprep.subr.mxu0 0.0
    %1211 = vmatpush1.msra.mxu0 0.0
    %1212 = vmatprep.subr.mxu0 0.0
    %1213 = vmatpush1.msra.mxu0 0.0
    %1214 = vmatprep.subr.mxu0 0.0
    %1215 = vmatpush1.msra.mxu0 0.0
    %1216 = vmatprep.subr.mxu0 0.0
    %1217 = vmatpush1.msra.mxu0 0.0
    %1218 = vmatprep.subr.mxu0 0.0
    %1219 = vmatpush1.msra.mxu0 0.0
    %1220 = vmatprep.subr.mxu0 0.0
    %1221 = vmatpush1.msra.mxu0 0.0
    %1222 = vmatprep.subr.mxu0 0.0
    %1223 = vmatpush1.msra.mxu0 0.0
    %1224 = vmatprep.subr.mxu0 0.0
    %1225 = vmatpush1.msra.mxu0 0.0
    %1226 = vmatprep.subr.mxu0 0.0
    %1227 = vmatpush1.msra.mxu0 0.0
    %1228 = vmatprep.subr.mxu0 0.0
    %1229 = vmatpush1.msra.mxu0 0.0
    %1230 = vmatprep.subr.mxu0 0.0
    %1231 = vmatpush1.msra.mxu0 0.0
    %1232 = vmatprep.subr.mxu0 0.0
    %1233 = vmatpush1.msra.mxu0 0.0
    %1234 = vmatprep.subr.mxu0 0.0
    %1235 = vmatpush1.msra.mxu0 %v128
    %1236 = vmatprep.subr.mxu0 0.0
    %1237 = vmatpush1.msra.mxu0 %v127
    %1238 = vmatprep.subr.mxu0 0.0
    %1239 = vmatpush1.msra.mxu0 %v126
    %1240 = vmatprep.subr.mxu0 0.0
    %1241 = vmatpush1.msra.mxu0 %v125
    %1242 = vmatprep.subr.mxu0 0.0
    %1243 = vmatpush2.msra.mxu0 0.0
    %1244 = vmatprep.subr.mxu0 0.0
    %1245 = vmatpush2.msra.mxu0 0.0
    %1246 = vmatprep.subr.mxu0 0.0
    %1247 = vmatpush2.msra.mxu0 0.0
    %1248 = vmatprep.subr.mxu0 0.0
    %1249 = vmatpush2.msra.mxu0 0.0
    %1250 = vmatprep.subr.mxu0 0.0
    %1251 = vmatpush2.msra.mxu0 0.0
    %1252 = vmatprep.subr.mxu0 0.0
    %1253 = vmatpush2.msra.mxu0 0.0
    %1254 = vmatprep.subr.mxu0 0.0
    %1255 = vmatpush2.msra.mxu0 0.0
    %1256 = vmatprep.subr.mxu0 0.0
    %1257 = vmatpush2.msra.mxu0 0.0
    %1258 = vmatprep.subr.mxu0 0.0
    %1259 = vmatpush2.msra.mxu0 0.0
    %1260 = vmatprep.subr.mxu0 0.0
    %1261 = vmatpush2.msra.mxu0 0.0
    %1262 = vmatprep.subr.mxu0 0.0
    %1263 = vmatpush2.msra.mxu0 0.0
    %1264 = vmatprep.subr.mxu0 0.0
    %1265 = vmatpush2.msra.mxu0 0.0
    %1266 = vmatprep.subr.mxu0 0.0
    %1267 = vmatpush2.msra.mxu0 0.0
    %1268 = vmatprep.subr.mxu0 0.0
    %1269 = vmatpush2.msra.mxu0 0.0
    %1270 = vmatprep.subr.mxu0 0.0
    %1271 = vmatpush2.msra.mxu0 0.0
    %1272 = vmatprep.subr.mxu0 0.0
    %1273 = vmatpush2.msra.mxu0 0.0
    %1274 = vmatprep.mubr.f32.mxu0 0.0
    %1275 = vmatmul.mubr.f32.gmra.mxu0 %v1208
    %v1276 = vpop.f32.mrf.mxu0
    %v1277 = vadd.f32 0.0, %v1276
    %v1278 = vpop.f32.mrf.mxu0
    %1279 = vdwg.mxu0
    %v1281 = vrot.slane %v1277, 6
    %v1283 = vadd.f32 %v122, %v1281
    %v1284 = vtanh.pop %v1283
    %v1285 = vxor.u32 %v1283, 2147483648
    %v1286 = vmul.f32 %v1285, 1.442695
    %v1287 = vpow.pop %v1286
    %v1288 = vadd.f32 %v1287, 1.0
    %v1289 = vrcp.pop %v1288
    %v1290 = vmul.f32 1.0, %v1289
    %v1291 = vsel %vm216, %v1284, %v1290
    %v1293 = vrot.slane %v1094, 6
    %v1295 = vmul.f32 %v1291, %v1293
    %1297 = vrot.lane.b32.xlu0 %v1291, 64
    %v1298 = vpop.permute.xlu0 %1297
    %v1300 = vmul.f32 %v1291, %v1298
    %1302 = vrot.lane.b32.xlu0 %v1300, 32
    %v1303 = vpop.permute.xlu0 %1302
    %v1305 = vadd.f32 %v1295, %v1303
    %v1306 = vtanh.pop %v1305
    %1308 = vrot.lane.b32.xlu0 %v1306, 64
    %v1309 = vpop.permute.xlu0 %1308
    %v1311 = vmul.f32 %v1291, %v1309
    %1313 = vrot.lane.b32.xlu0 %v1311, 32
    %v1314 = vpop.permute.xlu0 %1313
    %v1317 = vrot.slane %v1207, 6
    %1318 = vrot.lane.b32.xlu0 %v1317, 64
    %v1319 = vpop.permute.xlu0 %1318
    %v1321 = vsel %vm43, %v1314, %v1319
    %v1323 = vrot.slane %v1321, 2
    %v1324 = vsel %vm253, %v1323, 0
    %1326 = vmatprep.subr.mxu0 0.0
    %1327 = vmatpush1.msra.mxu0 0.0
    %1328 = vmatprep.subr.mxu0 0.0
    %1329 = vmatpush1.msra.mxu0 0.0
    %1330 = vmatprep.subr.mxu0 0.0
    %1331 = vmatpush1.msra.mxu0 0.0
    %1332 = vmatprep.subr.mxu0 0.0
    %1333 = vmatpush1.msra.mxu0 0.0
    %1334 = vmatprep.subr.mxu0 0.0
    %1335 = vmatpush1.msra.mxu0 0.0
    %1336 = vmatprep.subr.mxu0 0.0
    %1337 = vmatpush1.msra.mxu0 0.0
    %1338 = vmatprep.subr.mxu0 0.0
    %1339 = vmatpush1.msra.mxu0 0.0
    %1340 = vmatprep.subr.mxu0 0.0
    %1341 = vmatpush1.msra.mxu0 0.0
    %1342 = vmatprep.subr.mxu0 0.0
    %1343 = vmatpush1.msra.mxu0 %v136
    %1344 = vmatprep.subr.mxu0 0.0
    %1345 = vmatpush1.msra.mxu0 %v135
    %1346 = vmatprep.subr.mxu0 0.0
    %1347 = vmatpush1.msra.mxu0 %v134
    %1348 = vmatprep.subr.mxu0 0.0
    %1349 = vmatpush1.msra.mxu0 %v133
    %1350 = vmatprep.subr.mxu0 0.0
    %1351 = vmatpush1.msra.mxu0 %v132
    %1352 = vmatprep.subr.mxu0 0.0
    %1353 = vmatpush1.msra.mxu0 %v131
    %1354 = vmatprep.subr.mxu0 0.0
    %1355 = vmatpush1.msra.mxu0 %v130
    %1356 = vmatprep.subr.mxu0 0.0
    %1357 = vmatpush1.msra.mxu0 %v129
    %1358 = vmatprep.subr.mxu0 0.0
    %1359 = vmatpush2.msra.mxu0 0.0
    %1360 = vmatprep.subr.mxu0 0.0
    %1361 = vmatpush2.msra.mxu0 0.0
    %1362 = vmatprep.subr.mxu0 0.0
    %1363 = vmatpush2.msra.mxu0 0.0
    %1364 = vmatprep.subr.mxu0 0.0
    %1365 = vmatpush2.msra.mxu0 0.0
    %1366 = vmatprep.subr.mxu0 0.0
    %1367 = vmatpush2.msra.mxu0 0.0
    %1368 = vmatprep.subr.mxu0 0.0
    %1369 = vmatpush2.msra.mxu0 0.0
    %1370 = vmatprep.subr.mxu0 0.0
    %1371 = vmatpush2.msra.mxu0 0.0
    %1372 = vmatprep.subr.mxu0 0.0
    %1373 = vmatpush2.msra.mxu0 0.0
    %1374 = vmatprep.subr.mxu0 0.0
    %1375 = vmatpush2.msra.mxu0 0.0
    %1376 = vmatprep.subr.mxu0 0.0
    %1377 = vmatpush2.msra.mxu0 0.0
    %1378 = vmatprep.subr.mxu0 0.0
    %1379 = vmatpush2.msra.mxu0 0.0
    %1380 = vmatprep.subr.mxu0 0.0
    %1381 = vmatpush2.msra.mxu0 0.0
    %1382 = vmatprep.subr.mxu0 0.0
    %1383 = vmatpush2.msra.mxu0 0.0
    %1384 = vmatprep.subr.mxu0 0.0
    %1385 = vmatpush2.msra.mxu0 0.0
    %1386 = vmatprep.subr.mxu0 0.0
    %1387 = vmatpush2.msra.mxu0 0.0
    %1388 = vmatprep.subr.mxu0 0.0
    %1389 = vmatpush2.msra.mxu0 0.0
    %1390 = vmatprep.mubr.f32.mxu0 0.0
    %1391 = vmatmul.mubr.f32.gmra.mxu0 %v1324
    %v1392 = vpop.f32.mrf.mxu0
    %v1393 = vadd.f32 %v251, %v1392
    %v1394 = vpop.f32.mrf.mxu0
    %1395 = vdwg.mxu0
    %v1396 = vtanh.pop %v1393
    %v1397 = vxor.u32 %v1393, 2147483648
    %v1398 = vmul.f32 %v1397, 1.442695
    %v1399 = vpow.pop %v1398
    %v1400 = vadd.f32 %v1399, 1.0
    %v1401 = vrcp.pop %v1400
    %v1402 = vmul.f32 1.0, %v1401
    %v1403 = vsel %vm216, %v1396, %v1402
    %v1404 = vmul.f32 %v1403, %v1201
    %1406 = vrot.lane.b32.xlu0 %v1403, 64
    %v1407 = vpop.permute.xlu0 %1406
    %v1409 = vmul.f32 %v1403, %v1407
    %1411 = vrot.lane.b32.xlu0 %v1409, 32
    %v1412 = vpop.permute.xlu0 %1411
    %v1414 = vadd.f32 %v1404, %v1412
    %v1415 = vtanh.pop %v1414
    %1417 = vrot.lane.b32.xlu0 %v1415, 64
    %v1418 = vpop.permute.xlu0 %1417
    %v1420 = vmul.f32 %v1403, %v1418
    %v1421 = vrot.slane %v1311, 2
    %1422 = vrot.lane.b32.xlu0 %v1421, 32
    %v1423 = vpop.permute.xlu0 %1422
    %v1424 = vsel %vm43, %v1423, 0
    %1426 = vmatprep.subr.mxu0 0.0
    %1427 = vmatpush1.msra.mxu0 0.0
    %1428 = vmatprep.subr.mxu0 0.0
    %1429 = vmatpush1.msra.mxu0 0.0
    %1430 = vmatprep.subr.mxu0 0.0
    %1431 = vmatpush1.msra.mxu0 0.0
    %1432 = vmatprep.subr.mxu0 0.0
    %1433 = vmatpush1.msra.mxu0 0.0
    %1434 = vmatprep.subr.mxu0 0.0
    %1435 = vmatpush1.msra.mxu0 0.0
    %1436 = vmatprep.subr.mxu0 0.0
    %1437 = vmatpush1.msra.mxu0 0.0
    %1438 = vmatprep.subr.mxu0 0.0
    %1439 = vmatpush1.msra.mxu0 0.0
    %1440 = vmatprep.subr.mxu0 0.0
    %1441 = vmatpush1.msra.mxu0 0.0
    %1442 = vmatprep.subr.mxu0 0.0
    %1443 = vmatpush1.msra.mxu0 0.0
    %1444 = vmatprep.subr.mxu0 0.0
    %1445 = vmatpush1.msra.mxu0 0.0
    %1446 = vmatprep.subr.mxu0 0.0
    %1447 = vmatpush1.msra.mxu0 0.0
    %1448 = vmatprep.subr.mxu0 0.0
    %1449 = vmatpush1.msra.mxu0 0.0
    %1450 = vmatprep.subr.mxu0 0.0
    %1451 = vmatpush1.msra.mxu0 %v128
    %1452 = vmatprep.subr.mxu0 0.0
    %1453 = vmatpush1.msra.mxu0 %v127
    %1454 = vmatprep.subr.mxu0 0.0
    %1455 = vmatpush1.msra.mxu0 %v126
    %1456 = vmatprep.subr.mxu0 0.0
    %1457 = vmatpush1.msra.mxu0 %v125
    %1458 = vmatprep.subr.mxu0 0.0
    %1459 = vmatpush2.msra.mxu0 0.0
    %1460 = vmatprep.subr.mxu0 0.0
    %1461 = vmatpush2.msra.mxu0 0.0
    %1462 = vmatprep.subr.mxu0 0.0
    %1463 = vmatpush2.msra.mxu0 0.0
    %1464 = vmatprep.subr.mxu0 0.0
    %1465 = vmatpush2.msra.mxu0 0.0
    %1466 = vmatprep.subr.mxu0 0.0
    %1467 = vmatpush2.msra.mxu0 0.0
    %1468 = vmatprep.subr.mxu0 0.0
    %1469 = vmatpush2.msra.mxu0 0.0
    %1470 = vmatprep.subr.mxu0 0.0
    %1471 = vmatpush2.msra.mxu0 0.0
    %1472 = vmatprep.subr.mxu0 0.0
    %1473 = vmatpush2.msra.mxu0 0.0
    %1474 = vmatprep.subr.mxu0 0.0
    %1475 = vmatpush2.msra.mxu0 0.0
    %1476 = vmatprep.subr.mxu0 0.0
    %1477 = vmatpush2.msra.mxu0 0.0
    %1478 = vmatprep.subr.mxu0 0.0
    %1479 = vmatpush2.msra.mxu0 0.0
    %1480 = vmatprep.subr.mxu0 0.0
    %1481 = vmatpush2.msra.mxu0 0.0
    %1482 = vmatprep.subr.mxu0 0.0
    %1483 = vmatpush2.msra.mxu0 0.0
    %1484 = vmatprep.subr.mxu0 0.0
    %1485 = vmatpush2.msra.mxu0 0.0
    %1486 = vmatprep.subr.mxu0 0.0
    %1487 = vmatpush2.msra.mxu0 0.0
    %1488 = vmatprep.subr.mxu0 0.0
    %1489 = vmatpush2.msra.mxu0 0.0
    %1490 = vmatprep.mubr.f32.mxu0 0.0
    %1491 = vmatmul.mubr.f32.gmra.mxu0 %v1424
    %v1492 = vpop.f32.mrf.mxu0
    %v1493 = vadd.f32 0.0, %v1492
    %v1494 = vpop.f32.mrf.mxu0
    %1495 = vdwg.mxu0
    %v1497 = vrot.slane %v1493, 4
    %v1499 = vadd.f32 %v122, %v1497
    %v1500 = vtanh.pop %v1499
    %v1501 = vxor.u32 %v1499, 2147483648
    %v1502 = vmul.f32 %v1501, 1.442695
    %v1503 = vpow.pop %v1502
    %v1504 = vadd.f32 %v1503, 1.0
    %v1505 = vrcp.pop %v1504
    %v1506 = vmul.f32 1.0, %v1505
    %v1507 = vsel %vm216, %v1500, %v1506
    %v1509 = vrot.slane %v1305, 6
    %v1511 = vmul.f32 %v1507, %v1509
    %1513 = vrot.lane.b32.xlu0 %v1507, 64
    %v1514 = vpop.permute.xlu0 %1513
    %v1516 = vmul.f32 %v1507, %v1514
    %1518 = vrot.lane.b32.xlu0 %v1516, 32
    %v1519 = vpop.permute.xlu0 %1518
    %v1521 = vadd.f32 %v1511, %v1519
    %v1522 = vtanh.pop %v1521
    %1524 = vrot.lane.b32.xlu0 %v1522, 64
    %v1525 = vpop.permute.xlu0 %1524
    %v1527 = vmul.f32 %v1507, %v1525
    %1529 = vrot.lane.b32.xlu0 %v1527, 32
    %v1530 = vpop.permute.xlu0 %1529
    %v1533 = vrot.slane %v1420, 4
    %1534 = vrot.lane.b32.xlu0 %v1533, 64
    %v1535 = vpop.permute.xlu0 %1534
    %v1537 = vsel %vm43, %v1530, %v1535
    %v1539 = vrot.slane %v1537, 4
    %v1540 = vsel %vm253, %v1539, 0
    %1542 = vmatprep.subr.mxu0 0.0
    %1543 = vmatpush1.msra.mxu0 0.0
    %1544 = vmatprep.subr.mxu0 0.0
    %1545 = vmatpush1.msra.mxu0 0.0
    %1546 = vmatprep.subr.mxu0 0.0
    %1547 = vmatpush1.msra.mxu0 0.0
    %1548 = vmatprep.subr.mxu0 0.0
    %1549 = vmatpush1.msra.mxu0 0.0
    %1550 = vmatprep.subr.mxu0 0.0
    %1551 = vmatpush1.msra.mxu0 0.0
    %1552 = vmatprep.subr.mxu0 0.0
    %1553 = vmatpush1.msra.mxu0 0.0
    %1554 = vmatprep.subr.mxu0 0.0
    %1555 = vmatpush1.msra.mxu0 0.0
    %1556 = vmatprep.subr.mxu0 0.0
    %1557 = vmatpush1.msra.mxu0 0.0
    %1558 = vmatprep.subr.mxu0 0.0
    %1559 = vmatpush1.msra.mxu0 %v136
    %1560 = vmatprep.subr.mxu0 0.0
    %1561 = vmatpush1.msra.mxu0 %v135
    %1562 = vmatprep.subr.mxu0 0.0
    %1563 = vmatpush1.msra.mxu0 %v134
    %1564 = vmatprep.subr.mxu0 0.0
    %1565 = vmatpush1.msra.mxu0 %v133
    %1566 = vmatprep.subr.mxu0 0.0
    %1567 = vmatpush1.msra.mxu0 %v132
    %1568 = vmatprep.subr.mxu0 0.0
    %1569 = vmatpush1.msra.mxu0 %v131
    %1570 = vmatprep.subr.mxu0 0.0
    %1571 = vmatpush1.msra.mxu0 %v130
    %1572 = vmatprep.subr.mxu0 0.0
    %1573 = vmatpush1.msra.mxu0 %v129
    %1574 = vmatprep.subr.mxu0 0.0
    %1575 = vmatpush2.msra.mxu0 0.0
    %1576 = vmatprep.subr.mxu0 0.0
    %1577 = vmatpush2.msra.mxu0 0.0
    %1578 = vmatprep.subr.mxu0 0.0
    %1579 = vmatpush2.msra.mxu0 0.0
    %1580 = vmatprep.subr.mxu0 0.0
    %1581 = vmatpush2.msra.mxu0 0.0
    %1582 = vmatprep.subr.mxu0 0.0
    %1583 = vmatpush2.msra.mxu0 0.0
    %1584 = vmatprep.subr.mxu0 0.0
    %1585 = vmatpush2.msra.mxu0 0.0
    %1586 = vmatprep.subr.mxu0 0.0
    %1587 = vmatpush2.msra.mxu0 0.0
    %1588 = vmatprep.subr.mxu0 0.0
    %1589 = vmatpush2.msra.mxu0 0.0
    %1590 = vmatprep.subr.mxu0 0.0
    %1591 = vmatpush2.msra.mxu0 0.0
    %1592 = vmatprep.subr.mxu0 0.0
    %1593 = vmatpush2.msra.mxu0 0.0
    %1594 = vmatprep.subr.mxu0 0.0
    %1595 = vmatpush2.msra.mxu0 0.0
    %1596 = vmatprep.subr.mxu0 0.0
    %1597 = vmatpush2.msra.mxu0 0.0
    %1598 = vmatprep.subr.mxu0 0.0
    %1599 = vmatpush2.msra.mxu0 0.0
    %1600 = vmatprep.subr.mxu0 0.0
    %1601 = vmatpush2.msra.mxu0 0.0
    %1602 = vmatprep.subr.mxu0 0.0
    %1603 = vmatpush2.msra.mxu0 0.0
    %1604 = vmatprep.subr.mxu0 0.0
    %1605 = vmatpush2.msra.mxu0 0.0
    %1606 = vmatprep.mubr.f32.mxu0 0.0
    %1607 = vmatmul.mubr.f32.gmra.mxu0 %v1540
    %v1608 = vpop.f32.mrf.mxu0
    %v1609 = vadd.f32 %v251, %v1608
    %v1610 = vpop.f32.mrf.mxu0
    %1611 = vdwg.mxu0
    %v1612 = vtanh.pop %v1609
    %v1613 = vxor.u32 %v1609, 2147483648
    %v1614 = vmul.f32 %v1613, 1.442695
    %v1615 = vpow.pop %v1614
    %v1616 = vadd.f32 %v1615, 1.0
    %v1617 = vrcp.pop %v1616
    %v1618 = vmul.f32 1.0, %v1617
    %v1619 = vsel %vm216, %v1612, %v1618
    %v1620 = vmul.f32 %v1619, %v1414
    %1622 = vrot.lane.b32.xlu0 %v1619, 64
    %v1623 = vpop.permute.xlu0 %1622
    %v1625 = vmul.f32 %v1619, %v1623
    %1627 = vrot.lane.b32.xlu0 %v1625, 32
    %v1628 = vpop.permute.xlu0 %1627
    %v1630 = vadd.f32 %v1620, %v1628
    %v1631 = vtanh.pop %v1630
    %1633 = vrot.lane.b32.xlu0 %v1631, 64
    %v1634 = vpop.permute.xlu0 %1633
    %v1636 = vmul.f32 %v1619, %v1634
    %v1637 = vrot.slane %v1527, 4
    %1638 = vrot.lane.b32.xlu0 %v1637, 32
    %v1639 = vpop.permute.xlu0 %1638
    %v1640 = vsel %vm43, %v1639, 0
    %1642 = vmatprep.subr.mxu0 0.0
    %1643 = vmatpush1.msra.mxu0 0.0
    %1644 = vmatprep.subr.mxu0 0.0
    %1645 = vmatpush1.msra.mxu0 0.0
    %1646 = vmatprep.subr.mxu0 0.0
    %1647 = vmatpush1.msra.mxu0 0.0
    %1648 = vmatprep.subr.mxu0 0.0
    %1649 = vmatpush1.msra.mxu0 0.0
    %1650 = vmatprep.subr.mxu0 0.0
    %1651 = vmatpush1.msra.mxu0 0.0
    %1652 = vmatprep.subr.mxu0 0.0
    %1653 = vmatpush1.msra.mxu0 0.0
    %1654 = vmatprep.subr.mxu0 0.0
    %1655 = vmatpush1.msra.mxu0 0.0
    %1656 = vmatprep.subr.mxu0 0.0
    %1657 = vmatpush1.msra.mxu0 0.0
    %1658 = vmatprep.subr.mxu0 0.0
    %1659 = vmatpush1.msra.mxu0 0.0
    %1660 = vmatprep.subr.mxu0 0.0
    %1661 = vmatpush1.msra.mxu0 0.0
    %1662 = vmatprep.subr.mxu0 0.0
    %1663 = vmatpush1.msra.mxu0 0.0
    %1664 = vmatprep.subr.mxu0 0.0
    %1665 = vmatpush1.msra.mxu0 0.0
    %1666 = vmatprep.subr.mxu0 0.0
    %1667 = vmatpush1.msra.mxu0 %v128
    %1668 = vmatprep.subr.mxu0 0.0
    %1669 = vmatpush1.msra.mxu0 %v127
    %1670 = vmatprep.subr.mxu0 0.0
    %1671 = vmatpush1.msra.mxu0 %v126
    %1672 = vmatprep.subr.mxu0 0.0
    %1673 = vmatpush1.msra.mxu0 %v125
    %1674 = vmatprep.subr.mxu0 0.0
    %1675 = vmatpush2.msra.mxu0 0.0
    %1676 = vmatprep.subr.mxu0 0.0
    %1677 = vmatpush2.msra.mxu0 0.0
    %1678 = vmatprep.subr.mxu0 0.0
    %1679 = vmatpush2.msra.mxu0 0.0
    %1680 = vmatprep.subr.mxu0 0.0
    %1681 = vmatpush2.msra.mxu0 0.0
    %1682 = vmatprep.subr.mxu0 0.0
    %1683 = vmatpush2.msra.mxu0 0.0
    %1684 = vmatprep.subr.mxu0 0.0
    %1685 = vmatpush2.msra.mxu0 0.0
    %1686 = vmatprep.subr.mxu0 0.0
    %1687 = vmatpush2.msra.mxu0 0.0
    %1688 = vmatprep.subr.mxu0 0.0
    %1689 = vmatpush2.msra.mxu0 0.0
    %1690 = vmatprep.subr.mxu0 0.0
    %1691 = vmatpush2.msra.mxu0 0.0
    %1692 = vmatprep.subr.mxu0 0.0
    %1693 = vmatpush2.msra.mxu0 0.0
    %1694 = vmatprep.subr.mxu0 0.0
    %1695 = vmatpush2.msra.mxu0 0.0
    %1696 = vmatprep.subr.mxu0 0.0
    %1697 = vmatpush2.msra.mxu0 0.0
    %1698 = vmatprep.subr.mxu0 0.0
    %1699 = vmatpush2.msra.mxu0 0.0
    %1700 = vmatprep.subr.mxu0 0.0
    %1701 = vmatpush2.msra.mxu0 0.0
    %1702 = vmatprep.subr.mxu0 0.0
    %1703 = vmatpush2.msra.mxu0 0.0
    %1704 = vmatprep.subr.mxu0 0.0
    %1705 = vmatpush2.msra.mxu0 0.0
    %1706 = vmatprep.mubr.f32.mxu0 0.0
    %1707 = vmatmul.mubr.f32.gmra.mxu0 %v1640
    %v1708 = vpop.f32.mrf.mxu0
    %v1709 = vadd.f32 0.0, %v1708
    %v1710 = vpop.f32.mrf.mxu0
    %1711 = vdwg.mxu0
    %v1713 = vrot.slane %v1709, 2
    %v1715 = vadd.f32 %v122, %v1713
    %v1716 = vtanh.pop %v1715
    %v1717 = vxor.u32 %v1715, 2147483648
    %v1718 = vmul.f32 %v1717, 1.442695
    %v1719 = vpow.pop %v1718
    %v1720 = vadd.f32 %v1719, 1.0
    %v1721 = vrcp.pop %v1720
    %v1722 = vmul.f32 1.0, %v1721
    %v1723 = vsel %vm216, %v1716, %v1722
    %v1725 = vrot.slane %v1521, 6
    %v1727 = vmul.f32 %v1723, %v1725
    %1729 = vrot.lane.b32.xlu0 %v1723, 64
    %v1730 = vpop.permute.xlu0 %1729
    %v1732 = vmul.f32 %v1723, %v1730
    %1734 = vrot.lane.b32.xlu0 %v1732, 32
    %v1735 = vpop.permute.xlu0 %1734
    %v1737 = vadd.f32 %v1727, %v1735
    %v1738 = vtanh.pop %v1737
    %1740 = vrot.lane.b32.xlu0 %v1738, 64
    %v1741 = vpop.permute.xlu0 %1740
    %v1743 = vmul.f32 %v1723, %v1741
    %1745 = vrot.lane.b32.xlu0 %v1743, 32
    %v1746 = vpop.permute.xlu0 %1745
    %v1749 = vrot.slane %v1636, 2
    %1750 = vrot.lane.b32.xlu0 %v1749, 64
    %v1751 = vpop.permute.xlu0 %1750
    %v1753 = vsel %vm43, %v1746, %v1751
    %v1755 = vrot.slane %v1753, 6
    %v1756 = vsel %vm253, %v1755, 0
    %1758 = vmatprep.subr.mxu0 0.0
    %1759 = vmatpush1.msra.mxu0 0.0
    %1760 = vmatprep.subr.mxu0 0.0
    %1761 = vmatpush1.msra.mxu0 0.0
    %1762 = vmatprep.subr.mxu0 0.0
    %1763 = vmatpush1.msra.mxu0 0.0
    %1764 = vmatprep.subr.mxu0 0.0
    %1765 = vmatpush1.msra.mxu0 0.0
    %1766 = vmatprep.subr.mxu0 0.0
    %1767 = vmatpush1.msra.mxu0 0.0
    %1768 = vmatprep.subr.mxu0 0.0
    %1769 = vmatpush1.msra.mxu0 0.0
    %1770 = vmatprep.subr.mxu0 0.0
    %1771 = vmatpush1.msra.mxu0 0.0
    %1772 = vmatprep.subr.mxu0 0.0
    %1773 = vmatpush1.msra.mxu0 0.0
    %1774 = vmatprep.subr.mxu0 0.0
    %1775 = vmatpush1.msra.mxu0 %v136
    %1776 = vmatprep.subr.mxu0 0.0
    %1777 = vmatpush1.msra.mxu0 %v135
    %1778 = vmatprep.subr.mxu0 0.0
    %1779 = vmatpush1.msra.mxu0 %v134
    %1780 = vmatprep.subr.mxu0 0.0
    %1781 = vmatpush1.msra.mxu0 %v133
    %1782 = vmatprep.subr.mxu0 0.0
    %1783 = vmatpush1.msra.mxu0 %v132
    %1784 = vmatprep.subr.mxu0 0.0
    %1785 = vmatpush1.msra.mxu0 %v131
    %1786 = vmatprep.subr.mxu0 0.0
    %1787 = vmatpush1.msra.mxu0 %v130
    %1788 = vmatprep.subr.mxu0 0.0
    %1789 = vmatpush1.msra.mxu0 %v129
    %1790 = vmatprep.subr.mxu0 0.0
    %1791 = vmatpush2.msra.mxu0 0.0
    %1792 = vmatprep.subr.mxu0 0.0
    %1793 = vmatpush2.msra.mxu0 0.0
    %1794 = vmatprep.subr.mxu0 0.0
    %1795 = vmatpush2.msra.mxu0 0.0
    %1796 = vmatprep.subr.mxu0 0.0
    %1797 = vmatpush2.msra.mxu0 0.0
    %1798 = vmatprep.subr.mxu0 0.0
    %1799 = vmatpush2.msra.mxu0 0.0
    %1800 = vmatprep.subr.mxu0 0.0
    %1801 = vmatpush2.msra.mxu0 0.0
    %1802 = vmatprep.subr.mxu0 0.0
    %1803 = vmatpush2.msra.mxu0 0.0
    %1804 = vmatprep.subr.mxu0 0.0
    %1805 = vmatpush2.msra.mxu0 0.0
    %1806 = vmatprep.subr.mxu0 0.0
    %1807 = vmatpush2.msra.mxu0 0.0
    %1808 = vmatprep.subr.mxu0 0.0
    %1809 = vmatpush2.msra.mxu0 0.0
    %1810 = vmatprep.subr.mxu0 0.0
    %1811 = vmatpush2.msra.mxu0 0.0
    %1812 = vmatprep.subr.mxu0 0.0
    %1813 = vmatpush2.msra.mxu0 0.0
    %1814 = vmatprep.subr.mxu0 0.0
    %1815 = vmatpush2.msra.mxu0 0.0
    %1816 = vmatprep.subr.mxu0 0.0
    %1817 = vmatpush2.msra.mxu0 0.0
    %1818 = vmatprep.subr.mxu0 0.0
    %1819 = vmatpush2.msra.mxu0 0.0
    %1820 = vmatprep.subr.mxu0 0.0
    %1821 = vmatpush2.msra.mxu0 0.0
    %1822 = vmatprep.mubr.f32.mxu0 0.0
    %1823 = vmatmul.mubr.f32.gmra.mxu0 %v1756
    %v1824 = vpop.f32.mrf.mxu0
    %v1825 = vadd.f32 %v251, %v1824
    %v1826 = vpop.f32.mrf.mxu0
    %1827 = vdwg.mxu0
    %v1828 = vtanh.pop %v1825
    %v1829 = vxor.u32 %v1825, 2147483648
    %v1830 = vmul.f32 %v1829, 1.442695
    %v1831 = vpow.pop %v1830
    %v1832 = vadd.f32 %v1831, 1.0
    %v1833 = vrcp.pop %v1832
    %v1834 = vmul.f32 1.0, %v1833
    %v1835 = vsel %vm216, %v1828, %v1834
    %v1836 = vmul.f32 %v1835, %v1630
    %1838 = vrot.lane.b32.xlu0 %v1835, 64
    %v1839 = vpop.permute.xlu0 %1838
    %v1841 = vmul.f32 %v1835, %v1839
    %1843 = vrot.lane.b32.xlu0 %v1841, 32
    %v1844 = vpop.permute.xlu0 %1843
    %v1846 = vadd.f32 %v1836, %v1844
    %v1847 = vtanh.pop %v1846
    %1849 = vrot.lane.b32.xlu0 %v1847, 64
    %v1850 = vpop.permute.xlu0 %1849
    %v1852 = vmul.f32 %v1835, %v1850
    %1853 = vrot.lane.b32.xlu0 %v351, 32
    %v1854 = vpop.permute.xlu0 %1853
    %1856 = vrot.lane.b32.xlu0 %v564, 64
    %v1857 = vpop.permute.xlu0 %1856
    %1859 = vrot.lane.b32.xlu0 %v780, 96
    %v1860 = vpop.permute.xlu0 %1859
    %1862 = vrot.lane.b32.xlu0 %v1207, 32
    %v1863 = vpop.permute.xlu0 %1862
    %1865 = vrot.lane.b32.xlu0 %v1420, 64
    %v1866 = vpop.permute.xlu0 %1865
    %1868 = vrot.lane.b32.xlu0 %v1636, 96
    %v1869 = vpop.permute.xlu0 %1868
    %v1871 = vsel %vm43, %v1854, %v1857
    %v1872 = vsel %vm253, %v1871, %v1860
    %vm1873 = vcmask 785408
    %v1874 = vsel %vm1873, %v1872, %v996
    %v1875 = vsel %vm43, %v1863, %v1866
    %v1876 = vsel %vm253, %v1875, %v1869
    %v1877 = vsel %vm1873, %v1876, %v1852
    %v1878 = vld [vmem:[%s6] sm:$0xff]
    %v1879 = vld [vmem:[%s6 + $0x8] sm:$0xff]
    %v1880 = vld [vmem:[%s6 + $0x10] sm:$0xff]
    %v1881 = vld [vmem:[%s6 + $0x18] sm:$0xff]
    %v1882 = vld [vmem:[%s6 + $0x20] sm:$0xff]
    %v1883 = vld [vmem:[%s6 + $0x28] sm:$0xff]
    %v1884 = vld [vmem:[%s6 + $0x30] sm:$0xff]
    %v1885 = vld [vmem:[%s6 + $0x38] sm:$0xff]
    %v1886 = vld [vmem:[%s6 + $0x40] sm:$0xff]
    %v1887 = vld [vmem:[%s6 + $0x48] sm:$0xff]
    %v1888 = vld [vmem:[%s6 + $0x50] sm:$0xff]
    %v1889 = vld [vmem:[%s6 + $0x58] sm:$0xff]
    %v1890 = vld [vmem:[%s6 + $0x60] sm:$0xff]
    %v1891 = vld [vmem:[%s6 + $0x68] sm:$0xff]
    %v1892 = vld [vmem:[%s6 + $0x70] sm:$0xff]
    %v1893 = vld [vmem:[%s6 + $0x78] sm:$0xff]
    %v1894 = vld [vmem:[%s6 + $0x80] sm:$0xff]
    %v1895 = vld [vmem:[%s6 + $0x88] sm:$0xff]
    %v1896 = vld [vmem:[%s6 + $0x90] sm:$0xff]
    %v1897 = vld [vmem:[%s6 + $0x98] sm:$0xff]
    %v1898 = vld [vmem:[%s6 + $0xa0] sm:$0xff]
    %v1899 = vld [vmem:[%s6 + $0xa8] sm:$0xff]
    %v1900 = vld [vmem:[%s6 + $0xb0] sm:$0xff]
    %v1901 = vld [vmem:[%s6 + $0xb8] sm:$0xff]
    %v1902 = vld [vmem:[%s6 + $0xc0] sm:$0xff]
    %v1903 = vld [vmem:[%s6 + $0xc8] sm:$0xff]
    %v1904 = vld [vmem:[%s6 + $0xd0] sm:$0xff]
    %v1905 = vld [vmem:[%s6 + $0xd8] sm:$0xff]
    %v1906 = vld [vmem:[%s6 + $0xe0] sm:$0xff]
    %v1907 = vld [vmem:[%s6 + $0xe8] sm:$0xff]
    %v1908 = vld [vmem:[%s6 + $0xf0] sm:$0xff]
    %v1909 = vld [vmem:[%s6 + $0xf8] sm:$0xff]
    %v1910 = vld [vmem:[%s7] sm:$0x1]
    %v1912 = vlaneseq
    %v1913 = vshrl.u32 %v1912, 7
    %v1914 = vsub.s32 0, %v1913
    %v1915 = vrot.slane %v1910, %v1914
    %1917 = vmatprep.subr.mxu0 0.0
    %1918 = vmatpush1.msra.mxu0 %v1893
    %1919 = vmatprep.subr.mxu0 0.0
    %1920 = vmatpush1.msra.mxu0 %v1892
    %1921 = vmatprep.subr.mxu0 0.0
    %1922 = vmatpush1.msra.mxu0 %v1891
    %1923 = vmatprep.subr.mxu0 0.0
    %1924 = vmatpush1.msra.mxu0 %v1890
    %1925 = vmatprep.subr.mxu0 0.0
    %1926 = vmatpush1.msra.mxu0 %v1889
    %1927 = vmatprep.subr.mxu0 0.0
    %1928 = vmatpush1.msra.mxu0 %v1888
    %1929 = vmatprep.subr.mxu0 0.0
    %1930 = vmatpush1.msra.mxu0 %v1887
    %1931 = vmatprep.subr.mxu0 0.0
    %1932 = vmatpush1.msra.mxu0 %v1886
    %1933 = vmatprep.subr.mxu0 0.0
    %1934 = vmatpush1.msra.mxu0 %v1885
    %1935 = vmatprep.subr.mxu0 0.0
    %1936 = vmatpush1.msra.mxu0 %v1884
    %1937 = vmatprep.subr.mxu0 0.0
    %1938 = vmatpush1.msra.mxu0 %v1883
    %1939 = vmatprep.subr.mxu0 0.0
    %1940 = vmatpush1.msra.mxu0 %v1882
    %1941 = vmatprep.subr.mxu0 0.0
    %1942 = vmatpush1.msra.mxu0 %v1881
    %1943 = vmatprep.subr.mxu0 0.0
    %1944 = vmatpush1.msra.mxu0 %v1880
    %1945 = vmatprep.subr.mxu0 0.0
    %1946 = vmatpush1.msra.mxu0 %v1879
    %1947 = vmatprep.subr.mxu0 0.0
    %1948 = vmatpush1.msra.mxu0 %v1878
    %1949 = vmatprep.subr.mxu0 0.0
    %1950 = vmatpush2.msra.mxu0 %v1909
    %1951 = vmatprep.subr.mxu0 0.0
    %1952 = vmatpush2.msra.mxu0 %v1908
    %1953 = vmatprep.subr.mxu0 0.0
    %1954 = vmatpush2.msra.mxu0 %v1907
    %1955 = vmatprep.subr.mxu0 0.0
    %1956 = vmatpush2.msra.mxu0 %v1906
    %1957 = vmatprep.subr.mxu0 0.0
    %1958 = vmatpush2.msra.mxu0 %v1905
    %1959 = vmatprep.subr.mxu0 0.0
    %1960 = vmatpush2.msra.mxu0 %v1904
    %1961 = vmatprep.subr.mxu0 0.0
    %1962 = vmatpush2.msra.mxu0 %v1903
    %1963 = vmatprep.subr.mxu0 0.0
    %1964 = vmatpush2.msra.mxu0 %v1902
    %1965 = vmatprep.subr.mxu0 0.0
    %1966 = vmatpush2.msra.mxu0 %v1901
    %1967 = vmatprep.subr.mxu0 0.0
    %1968 = vmatpush2.msra.mxu0 %v1900
    %1969 = vmatprep.subr.mxu0 0.0
    %1970 = vmatpush2.msra.mxu0 %v1899
    %1971 = vmatprep.subr.mxu0 0.0
    %1972 = vmatpush2.msra.mxu0 %v1898
    %1973 = vmatprep.subr.mxu0 0.0
    %1974 = vmatpush2.msra.mxu0 %v1897
    %1975 = vmatprep.subr.mxu0 0.0
    %1976 = vmatpush2.msra.mxu0 %v1896
    %1977 = vmatprep.subr.mxu0 0.0
    %1978 = vmatpush2.msra.mxu0 %v1895
    %1979 = vmatprep.subr.mxu0 0.0
    %1980 = vmatpush2.msra.mxu0 %v1894
    %1981 = vmatprep.mubr.f32.mxu0 %v1877
    %1982 = vmatmul.mubr.f32.gmra.mxu0 %v1874
    %v1983 = vpop.f32.mrf.mxu0
    %v1984 = vadd.f32 %v1915, %v1983
    %v1985 = vpop.f32.mrf.mxu0
    %1986 = vdwg.mxu0
    %vm1987 = vcmask 25600
    %1988 = vst.msk [vmem:[#allocation2] sm:$0x3] %vm1987, %v1984
    // Predicated region
    $region34: #{tpu_custom_call.1} parent=1 // pred_check
      _
    $region35: #{tpu_custom_call.1} parent=1 // pred_check_branch
      %1990 = sbr.rel (0) target = $region37
    $region36: #{tpu_custom_call.1} parent=1 // pred_region
      %s1992 = ssub.s32 32, 32
      %1993 = vsyncadd [#allocation3], %s1992
      %s1995 = sshll.u32 [#allocation2], 4
      %s1996 = int_to_ptr.vmem [resolvable:$true] %s1995
      %1998 = dma.vmem_to_hbm [thread:$0]  %s1996, 32, %s8, [#allocation3]
    $region37: #{tpu_custom_call.1} parent=1 // pred_fallthru
      _
    // Predicated region
    $region38: #{tpu_custom_call.1} parent=1 // pred_check
      _
    $region39: #{tpu_custom_call.1} parent=1 // pred_check_branch
      %2000 = sbr.rel (0) target = $region41
    $region40: #{tpu_custom_call.1} parent=1 // pred_region
      %2001 = dma.done [#allocation3], 32
    $region41: #{tpu_custom_call.1} parent=1 // pred_fallthru
      _
    %2002 = vsyncpa [#allocation3], 1

</llo_original>
